<compile_context>
chip_gen: v7x
topology: tpu7x:2x2x1
jax: 0.10.0
libtpu: 0.0.40
codegen_flags: <defaults>
</compile_context>

<pallas_src>
import jax
import jax.numpy as jnp
from jax import lax
from jax.experimental import pallas as pl
from jax.experimental.pallas import tpu as pltpu

_MiB = 1024 * 1024


# --------------------------------------------------------------------------- #
# VMEM accounting helpers (padded bytes, not raw bytes)
# --------------------------------------------------------------------------- #
def _round_up(x, m):
    return ((x + m - 1) // m) * m


def _sublane_mult(itemsize):
    # 32-bit -> 8 sublanes, 16-bit -> 16, 8-bit -> 32
    return 8 * max(1, 4 // max(itemsize, 1))


def _vmem_limit_default():
    try:
        cap = int(pltpu.get_tpu_info().vmem_capacity_bytes)
    except Exception:
        cap = 64 * _MiB                      # conservative (v7x per-TC)
    # v7x (64 MiB/TC) -> 48 MiB; v5e/v6e (128 MiB) -> 96 MiB
    return max(32 * _MiB, min((3 * cap) // 4, 96 * _MiB))


def _pool_block_bytes(cb, D, HW, itemsize):
    sub = _sublane_mult(itemsize)
    return cb * _round_up(D, sub) * _round_up(HW, 128) * itemsize


def _pool_footprint(cb, D, HW, itemsize):
    blk = _pool_block_bytes(cb, D, HW, itemsize)
    # double-buffered input + (for sub-f32 x) a transient f32 widening pass
    widen = 0 if itemsize >= 4 else (blk * 4) // itemsize
    return 2 * blk + widen


def _excite_footprint(td, HW, C, Cr, itemsize):
    ts = td * HW
    sub = _sublane_mult(itemsize)
    x_blk = _round_up(C, sub) * _round_up(ts, 128) * itemsize    # x / o block
    row_f32 = _round_up(ts, 128) * 4
    gate = _round_up(C, 8) * row_f32                             # y / g f32 temps
    z_scr = _round_up(Cr, 8) * row_f32                           # relu'd squeeze scratch
    return 4 * x_blk + 2 * gate + z_scr                          # 2 in + 2 out buffers + temps


def _choose_channel_tile(C, D, HW, itemsize, budget, prefer_split):
    cands = sorted({cb for cb in range(8, C + 1, 8) if C % cb == 0} | {C})
    fitting = [cb for cb in cands if _pool_footprint(cb, D, HW, itemsize) <= budget]
    if not fitting:
        return cands[0]                       # smallest legal tile; caller raises the limit
    if prefer_split:
        halves = [cb for cb in fitting if cb <= C // 2]
        if halves:
            return max(halves)
    return max(fitting)


def _choose_plane_tile(D, HW, C, Cr, itemsize, budget, prefer_split):
    cands = sorted({td for td in range(1, D + 1)
                    if D % td == 0 and ((td * HW) % 128 == 0 or td == D)})
    fitting = [td for td in cands if _excite_footprint(td, HW, C, Cr, itemsize) <= budget]
    if not fitting:
        return cands[0]
    if prefer_split:
        halves = [td for td in fitting if td <= D // 2]
        if halves:
            return max(halves)
    return max(fitting)


# --------------------------------------------------------------------------- #
# Kernel 1: projected means (lane-dense blocks, no whole-block f32 copy)
# --------------------------------------------------------------------------- #
def _pool_kernel(x_ref, ph_ref, pw_ref, sd_ref, sh_ref, sw_ref):
    # x block: (1, Cb, D, HW) native dtype, lane axis = HW (lane dense).
    xb = x_ref[0]                                        # (Cb, D, HW) — never widened whole
    D = xb.shape[1]
    HW = xb.shape[2]
    H = ph_ref.shape[1]
    W = pw_ref.shape[1]
    # mean over (H, W): lane reduce, f32 accumulation fused into the reduction pass
    sd_ref[0] = jnp.sum(xb, axis=2, dtype=jnp.float32) * (1.0 / HW)           # (Cb, D)
    # D-reduced slab (sublane reduce), then split H / W with tiny 0/1 projections
    s_hw = jnp.sum(xb, axis=1, dtype=jnp.float32)                             # (Cb, HW)
    sh_ref[0] = jnp.dot(s_hw, ph_ref[...],
                        preferred_element_type=jnp.float32) * (1.0 / (D * W))  # (Cb, H)
    sw_ref[0] = jnp.dot(s_hw, pw_ref[...],
                        preferred_element_type=jnp.float32) * (1.0 / (D * H))  # (Cb, W)


# --------------------------------------------------------------------------- #
# Kernel 2: excite (one matmul / one sigmoid / one lane-dense store per step)
# --------------------------------------------------------------------------- #
def _excite_kernel(x_ref, zd_ref, zhw_ref, w2_ref, b2_ref, o_ref, z_ref):
    # x_ref:   (1, C, TS)     native dtype, TS = TD*HW (128-aligned tile or full S)
    # zd_ref:  (1, 1, Cr, TD) f32  conv_c(mean over H,W) for this step's TD d-planes
    # zhw_ref: (1, Cr, HW)    f32  conv_c(mean over D,W) + conv_c(mean over D,H) + b1
    # w2_ref:  (C, Cr) f32,  b2_ref: (C, 1) f32
    # z_ref:   (Cr, TS) f32 VMEM scratch (relu'd reduced squeeze tile)
    Cr = zhw_ref.shape[1]
    HW = zhw_ref.shape[2]
    TS = x_ref.shape[2]
    TD = TS // HW

    zhw = zhw_ref[0]                                     # (Cr, HW)
    zd_t = zd_ref[0, 0]                                  # (Cr, TD)

    if TD <= 8:
        # short static unroll; static (128-aligned when HW%128==0) scratch stores
        for t in range(TD):
            zcol = zd_t[:, t:t + 1]                      # (Cr, 1) static slice
            z_ref[:, t * HW:(t + 1) * HW] = jnp.maximum(zcol + zhw, 0.0)
    else:
        # rare fallback (only when HW%128 != 0 forces tile_d == D with large D)
        aligned = (HW % 128 == 0)

        def _fill(t, carry):
            onehot = lax.broadcasted_iota(jnp.int32, (1, TD), 1) == t
            zcol = jnp.sum(jnp.where(onehot, zd_t, 0.0), axis=1, keepdims=True)  # (Cr, 1)
            off = t * HW
            if aligned:
                off = pl.multiple_of(off, 128)
            z_ref[:, pl.ds(off, HW)] = jnp.maximum(zcol + zhw, 0.0)
            return carry

        lax.fori_loop(0, TD, _fill, 0)

    # one MXU matmul, one broadcast add, one EUP transcendental per grid step
    y = jnp.dot(w2_ref[...], z_ref[...], preferred_element_type=jnp.float32)   # (C, TS)
    y = y + b2_ref[...]
    g = 0.5 * (1.0 + jnp.tanh(0.5 * y))                  # sigmoid via a single tanh
    xt = x_ref[0]                                        # (C, TS) native dtype
    # NOTE: gate cast to x dtype before the multiply; exact for f32 x, ~bf16-ulp for bf16 x.
    o_ref[0] = (xt * g.astype(xt.dtype)).astype(o_ref.dtype)


# --------------------------------------------------------------------------- #
# Wrapper
# --------------------------------------------------------------------------- #
def project_excite_pallas(x, w1, b1, w2, b2, *, tile_d=None, tile_c=None, vmem_limit=None):
    """x: (B, C, D, H, W); w1: (Cr, C, 1,1,1); b1: (Cr,); w2: (C, Cr, 1,1,1); b2: (C,)."""
    B, C, D, H, W = x.shape
    Cr = w1.shape[0]
    HW = H * W
    S = D * HW
    itemsize = jnp.dtype(x.dtype).itemsize

    base_limit = _vmem_limit_default() if vmem_limit is None else int(vmem_limit)
    budget = base_limit - 4 * _MiB
    prefer_split = (B == 1)          # keep >= 2 steps on a parallel axis for v7x's 2 TCs

    # ---- Stage 1: projected means over lane-dense (..., D, HW) blocks ----
    if tile_c is None:
        tile_c = _choose_channel_tile(C, D, HW, itemsize, budget, prefer_split)
    assert C % tile_c == 0 and (tile_c % 8 == 0 or tile_c == C)
    pool_limit = int(max(base_limit, _pool_footprint(tile_c, D, HW, itemsize) + 4 * _MiB))

    x4 = x.reshape(B, C, D, HW)                          # free reshape, no transpose
    # tiny 0/1 projection matrices splitting the HW lane axis back into H and W
    hw_idx = jnp.arange(HW, dtype=jnp.int32)
    ph = (hw_idx[:, None] // W == jnp.arange(H, dtype=jnp.int32)[None, :]).astype(jnp.float32)
    pw = (hw_idx[:, None] % W == jnp.arange(W, dtype=jnp.int32)[None, :]).astype(jnp.float32)

    sd, sh, sw = pl.pallas_call(
        _pool_kernel,
        out_shape=(jax.ShapeDtypeStruct((B, C, D), jnp.float32),
                   jax.ShapeDtypeStruct((B, C, H), jnp.float32),
                   jax.ShapeDtypeStruct((B, C, W), jnp.float32)),
        grid_spec=pltpu.PrefetchScalarGridSpec(
            num_scalar_prefetch=0,
            grid=(B, C // tile_c),
            in_specs=[pl.BlockSpec((1, tile_c, D, HW), lambda b, c: (b, c, 0, 0)),
                      pl.BlockSpec((HW, H), lambda b, c: (0, 0)),
                      pl.BlockSpec((HW, W), lambda b, c: (0, 0))],
            out_specs=[pl.BlockSpec((1, tile_c, D), lambda b, c: (b, c, 0)),
                       pl.BlockSpec((1, tile_c, H), lambda b, c: (b, c, 0)),
                       pl.BlockSpec((1, tile_c, W), lambda b, c: (b, c, 0))]),
        compiler_params=pltpu.CompilerParams(
            dimension_semantics=("parallel", "parallel"),
            vmem_limit_bytes=pool_limit),
    )(x4, ph, pw)

    # ---- Tiny gate prep: conv_c on (D+H+W) pooled rows only (linearity) ----
    w1m = w1.reshape(Cr, C).astype(jnp.float32)
    zd = jnp.einsum('rc,bcd->brd', w1m, sd)                          # (B, Cr, D)
    zh = jnp.einsum('rc,bch->brh', w1m, sh)                          # (B, Cr, H)
    zw = jnp.einsum('rc,bcw->brw', w1m, sw)                          # (B, Cr, W)
    zhw = (zh[:, :, :, None] + zw[:, :, None, :]
           + b1.astype(jnp.float32).reshape(1, Cr, 1, 1)).reshape(B, Cr, HW)

    w2k = w2.reshape(C, Cr).astype(jnp.float32)
    b2k = b2.astype(jnp.float32).reshape(C, 1)

    # ---- Stage 2: excite over lane-dense (C, TD*HW) spatial tiles ----
    if tile_d is None:
        tile_d = _choose_plane_tile(D, HW, C, Cr, itemsize, budget, prefer_split)
    assert D % tile_d == 0 and ((tile_d * HW) % 128 == 0 or tile_d == D)
    TS = tile_d * HW
    excite_limit = int(max(base_limit, _excite_footprint(tile_d, HW, C, Cr, itemsize) + 4 * _MiB))

    # zd re-tiled (tiny tensor) so each grid step's TD columns form a full trailing block
    zd_t = zd.reshape(B, Cr, D // tile_d, tile_d).transpose(0, 2, 1, 3)   # (B, D/TD, Cr, TD)

    x3 = x.reshape(B, C, S)                              # free reshape, no transpose
    out3 = pl.pallas_call(
        _excite_kernel,
        out_shape=jax.ShapeDtypeStruct((B, C, S), x.dtype),
        grid_spec=pltpu.PrefetchScalarGridSpec(
            num_scalar_prefetch=0,
            grid=(B, D // tile_d),
            in_specs=[pl.BlockSpec((1, C, TS), lambda b, d: (b, 0, d)),
                      pl.BlockSpec((1, 1, Cr, tile_d), lambda b, d: (b, d, 0, 0)),
                      pl.BlockSpec((1, Cr, HW), lambda b, d: (b, 0, 0)),
                      pl.BlockSpec((C, Cr), lambda b, d: (0, 0)),
                      pl.BlockSpec((C, 1), lambda b, d: (0, 0))],
            out_specs=pl.BlockSpec((1, C, TS), lambda b, d: (b, 0, d)),
            scratch_shapes=[pltpu.VMEM((Cr, TS), jnp.float32)]),
        compiler_params=pltpu.CompilerParams(
            dimension_semantics=("parallel", "parallel"),
            vmem_limit_bytes=excite_limit),
    )(x3, zd_t, zhw, w2k, b2k)

    return out3.reshape(B, C, D, H, W)


# --------------------------------------------------------------------------- #
# Pure-JAX reference mirroring the PyTorch forward exactly (NCDHW)
# --------------------------------------------------------------------------- #
def project_excite_reference(x, w1, b1, w2, b2):
    B, C, D, H, W = x.shape
    sw = x.mean(axis=(2, 3), keepdims=True)              # (B,C,1,1,W)
    sh = x.mean(axis=(2, 4), keepdims=True)              # (B,C,1,H,1)
    sd = x.mean(axis=(3, 4), keepdims=True)              # (B,C,D,1,1)
    sq = sw + sh + sd                                    # (B,C,D,H,W)
    w1m = w1.reshape(w1.shape[0], C)
    z = jnp.einsum('rc,bcdhw->brdhw', w1m, sq) + b1.reshape(1, -1, 1, 1, 1)
    z = jax.nn.relu(z)
    w2m = w2.reshape(C, w1.shape[0])
    g = jnp.einsum('cr,brdhw->bcdhw', w2m, z) + b2.reshape(1, -1, 1, 1, 1)
    g = jax.nn.sigmoid(g)
    return x * g


if __name__ == "__main__":
    # Small shapes consistent with the module: (B, C, D, H, W); H*W multiple of 128.
    B, C, D, H, W = 2, 8, 8, 16, 16
    reduction_ratio = 2
    Cr = C // reduction_ratio

    key = jax.random.PRNGKey(0)
    kx, kw1, kb1, kw2, kb2 = jax.random.split(key, 5)

    x = jax.random.normal(kx, (B, C, D, H, W), dtype=jnp.float32)
    w1 = jax.random.normal(kw1, (Cr, C, 1, 1, 1), dtype=jnp.float32) * 0.5
    b1 = jax.random.normal(kb1, (Cr,), dtype=jnp.float32) * 0.1
    w2 = jax.random.normal(kw2, (C, Cr, 1, 1, 1), dtype=jnp.float32) * 0.5
    b2 = jax.random.normal(kb2, (C,), dtype=jnp.float32) * 0.1

    ref = jax.block_until_ready(project_excite_reference(x, w1, b1, w2, b2))

    pe = jax.jit(project_excite_pallas, static_argnames=("tile_d", "tile_c", "vmem_limit"))

    # Auto-tiled path (choosers pick the tiles).
    out = jax.block_until_ready(pe(x, w1, b1, w2, b2))
    assert out.shape == (B, C, D, H, W), out.shape
    err = float(jnp.max(jnp.abs(out - ref)))
    assert jnp.allclose(out, ref, atol=1e-4, rtol=1e-4), err

    # Explicit tile_d=2 exercises the multi-tile (B, D/TD) grid + zd block slicing.
    out2 = jax.block_until_ready(pe(x, w1, b1, w2, b2, tile_d=2))
    err2 = float(jnp.max(jnp.abs(out2 - ref)))
    assert jnp.allclose(out2, ref, atol=1e-4, rtol=1e-4), err2

    print("KERNEL_OK")
</pallas_src>

<mosaic_0001>
module attributes {stable_mosaic.version = 11 : i64} {
  func.func @_pool_kernel(%arg0: i32, %arg1: i32, %arg2: memref<1x8x8x256xf32, #tpu.memory_space<vmem>>, %arg3: memref<256x16xf32, #tpu.memory_space<vmem>>, %arg4: memref<256x16xf32, #tpu.memory_space<vmem>>, %arg5: memref<1x8x8xf32, #tpu.memory_space<vmem>>, %arg6: memref<1x8x16xf32, #tpu.memory_space<vmem>>, %arg7: memref<1x8x16xf32, #tpu.memory_space<vmem>>) attributes {dimension_semantics = [#tpu.dimension_semantics<parallel>, #tpu.dimension_semantics<parallel>], iteration_bounds = array<i64: 2, 1>, scalar_prefetch = 0 : i64, scratch_operands = 0 : i64, tpu.core_type = #tpu.core_type<tc>, window_params = [{transform_indices = @transform_0, window_bounds = array<i64: 1, 8, 8, 256>}, {pipeline_mode = #tpu.pipeline_mode<synchronous>, transform_indices = @transform_1, window_bounds = array<i64: 256, 16>}, {pipeline_mode = #tpu.pipeline_mode<synchronous>, transform_indices = @transform_2, window_bounds = array<i64: 256, 16>}, {transform_indices = @transform_3, window_bounds = array<i64: 1, 8, 8>}, {transform_indices = @transform_4, window_bounds = array<i64: 1, 8, 16>}, {transform_indices = @transform_5, window_bounds = array<i64: 1, 8, 16>}]} {
    %c0 = arith.constant 0 : index
    %c0_0 = arith.constant 0 : index
    %c0_1 = arith.constant 0 : index
    %c0_2 = arith.constant 0 : index
    %0 = vector.load %arg2[%c0, %c0_0, %c0_1, %c0_2] : memref<1x8x8x256xf32, #tpu.memory_space<vmem>>, vector<1x8x8x256xf32>
    %1 = vector.shape_cast %0 : vector<1x8x8x256xf32> to vector<8x8x256xf32>
    %cst = arith.constant dense<0.000000e+00> : vector<8x8xf32>
    %2 = vector.multi_reduction <add>, %1, %cst [2] : vector<8x8x256xf32> to vector<8x8xf32>
    %cst_3 = arith.constant 3.906250e-03 : f32
    %3 = vector.broadcast %cst_3 : f32 to vector<8x8xf32>
    %4 = arith.mulf %2, %3 : vector<8x8xf32>
    %c0_4 = arith.constant 0 : index
    %c0_5 = arith.constant 0 : index
    %c0_6 = arith.constant 0 : index
    %5 = vector.load %arg5[%c0_4, %c0_5, %c0_6] : memref<1x8x8xf32, #tpu.memory_space<vmem>>, vector<1x8x8xf32>
    %6 = vector.shape_cast %5 : vector<1x8x8xf32> to vector<8x8xf32>
    %7 = vector.shape_cast %4 : vector<8x8xf32> to vector<1x8x8xf32>
    tpu.vector_store %arg5[%c0_4, %c0_5, %c0_6], %7 {strides = array<i32>} : memref<1x8x8xf32, #tpu.memory_space<vmem>>, vector<1x8x8xf32>,
    %cst_7 = arith.constant dense<0.000000e+00> : vector<8x256xf32>
    %8 = vector.multi_reduction <add>, %1, %cst_7 [1] : vector<8x8x256xf32> to vector<8x256xf32>
    %c0_8 = arith.constant 0 : index
    %c0_9 = arith.constant 0 : index
    %9 = vector.load %arg3[%c0_8, %c0_9] : memref<256x16xf32, #tpu.memory_space<vmem>>, vector<256x16xf32>
    %cst_10 = arith.constant dense<0.000000e+00> : vector<8x16xf32>
    %10 = tpu.matmul %8, %9, %cst_10 {dimension_numbers = #tpu.dot_dimension_numbers<[1], [0], [0], [1], [0, 0, 1, 1], [], []>} : vector<8x256xf32>, vector<256x16xf32>, vector<8x16xf32> -> vector<8x16xf32>
    %cst_11 = arith.constant 7.812500e-03 : f32
    %11 = vector.broadcast %cst_11 : f32 to vector<8x16xf32>
    %12 = arith.mulf %10, %11 : vector<8x16xf32>
    %c0_12 = arith.constant 0 : index
    %c0_13 = arith.constant 0 : index
    %c0_14 = arith.constant 0 : index
    %13 = vector.load %arg6[%c0_12, %c0_13, %c0_14] : memref<1x8x16xf32, #tpu.memory_space<vmem>>, vector<1x8x16xf32>
    %14 = vector.shape_cast %13 : vector<1x8x16xf32> to vector<8x16xf32>
    %15 = vector.shape_cast %12 : vector<8x16xf32> to vector<1x8x16xf32>
    tpu.vector_store %arg6[%c0_12, %c0_13, %c0_14], %15 {strides = array<i32>} : memref<1x8x16xf32, #tpu.memory_space<vmem>>, vector<1x8x16xf32>,
    %c0_15 = arith.constant 0 : index
    %c0_16 = arith.constant 0 : index
    %16 = vector.load %arg4[%c0_15, %c0_16] : memref<256x16xf32, #tpu.memory_space<vmem>>, vector<256x16xf32>
    %cst_17 = arith.constant dense<0.000000e+00> : vector<8x16xf32>
    %17 = tpu.matmul %8, %16, %cst_17 {dimension_numbers = #tpu.dot_dimension_numbers<[1], [0], [0], [1], [0, 0, 1, 1], [], []>} : vector<8x256xf32>, vector<256x16xf32>, vector<8x16xf32> -> vector<8x16xf32>
    %cst_18 = arith.constant 7.812500e-03 : f32
    %18 = vector.broadcast %cst_18 : f32 to vector<8x16xf32>
    %19 = arith.mulf %17, %18 : vector<8x16xf32>
    %c0_19 = arith.constant 0 : index
    %c0_20 = arith.constant 0 : index
    %c0_21 = arith.constant 0 : index
    %20 = vector.load %arg7[%c0_19, %c0_20, %c0_21] : memref<1x8x16xf32, #tpu.memory_space<vmem>>, vector<1x8x16xf32>
    %21 = vector.shape_cast %20 : vector<1x8x16xf32> to vector<8x16xf32>
    %22 = vector.shape_cast %19 : vector<8x16xf32> to vector<1x8x16xf32>
    tpu.vector_store %arg7[%c0_19, %c0_20, %c0_21], %22 {strides = array<i32>} : memref<1x8x16xf32, #tpu.memory_space<vmem>>, vector<1x8x16xf32>,
    return
  }
  func.func @transform_0(%arg0: i32, %arg1: i32) -> (i32, i32, i32, i32) {
    %c0_i32 = arith.constant 0 : i32
    %c0_i32_0 = arith.constant 0 : i32
    %c0_i32_1 = arith.constant 0 : i32
    return %arg0, %arg1, %c0_i32, %c0_i32_0 : i32, i32, i32, i32
  }
  func.func @transform_1(%arg0: i32, %arg1: i32) -> (i32, i32) {
    %c0_i32 = arith.constant 0 : i32
    %c0_i32_0 = arith.constant 0 : i32
    %c0_i32_1 = arith.constant 0 : i32
    return %c0_i32, %c0_i32_0 : i32, i32
  }
  func.func @transform_2(%arg0: i32, %arg1: i32) -> (i32, i32) {
    %c0_i32 = arith.constant 0 : i32
    %c0_i32_0 = arith.constant 0 : i32
    %c0_i32_1 = arith.constant 0 : i32
    return %c0_i32, %c0_i32_0 : i32, i32
  }
  func.func @transform_3(%arg0: i32, %arg1: i32) -> (i32, i32, i32) {
    %c0_i32 = arith.constant 0 : i32
    %c0_i32_0 = arith.constant 0 : i32
    return %arg0, %arg1, %c0_i32 : i32, i32, i32
  }
  func.func @transform_4(%arg0: i32, %arg1: i32) -> (i32, i32, i32) {
    %c0_i32 = arith.constant 0 : i32
    %c0_i32_0 = arith.constant 0 : i32
    return %arg0, %arg1, %c0_i32 : i32, i32, i32
  }
  func.func @transform_5(%arg0: i32, %arg1: i32) -> (i32, i32, i32) {
    %c0_i32 = arith.constant 0 : i32
    %c0_i32_0 = arith.constant 0 : i32
    return %arg0, %arg1, %c0_i32 : i32, i32, i32
  }
}

module attributes {stable_mosaic.version = 11 : i64} {
  func.func @_excite_kernel(%arg0: i32, %arg1: i32, %arg2: memref<1x8x2048xf32, #tpu.memory_space<vmem>>, %arg3: memref<1x1x4x8xf32, #tpu.memory_space<vmem>>, %arg4: memref<1x4x256xf32, #tpu.memory_space<vmem>>, %arg5: memref<8x4xf32, #tpu.memory_space<vmem>>, %arg6: memref<8x1xf32, #tpu.memory_space<vmem>>, %arg7: memref<1x8x2048xf32, #tpu.memory_space<vmem>>, %arg8: memref<4x2048xf32, #tpu.memory_space<vmem>>) attributes {dimension_semantics = [#tpu.dimension_semantics<parallel>, #tpu.dimension_semantics<parallel>], iteration_bounds = array<i64: 2, 1>, scalar_prefetch = 0 : i64, scratch_operands = 1 : i64, tpu.core_type = #tpu.core_type<tc>, window_params = [{transform_indices = @transform_0, window_bounds = array<i64: 1, 8, 2048>}, {transform_indices = @transform_1, window_bounds = array<i64: 1, 1, 4, 8>}, {transform_indices = @transform_2, window_bounds = array<i64: 1, 4, 256>}, {pipeline_mode = #tpu.pipeline_mode<synchronous>, transform_indices = @transform_3, window_bounds = array<i64: 8, 4>}, {pipeline_mode = #tpu.pipeline_mode<synchronous>, transform_indices = @transform_4, window_bounds = array<i64: 8, 1>}, {transform_indices = @transform_5, window_bounds = array<i64: 1, 8, 2048>}]} {
    %c0 = arith.constant 0 : index
    %c0_0 = arith.constant 0 : index
    %c0_1 = arith.constant 0 : index
    %0 = vector.load %arg4[%c0, %c0_0, %c0_1] : memref<1x4x256xf32, #tpu.memory_space<vmem>>, vector<1x4x256xf32>
    %1 = vector.shape_cast %0 : vector<1x4x256xf32> to vector<4x256xf32>
    %c0_2 = arith.constant 0 : index
    %c0_3 = arith.constant 0 : index
    %c0_4 = arith.constant 0 : index
    %c0_5 = arith.constant 0 : index
    %2 = vector.load %arg3[%c0_2, %c0_3, %c0_4, %c0_5] : memref<1x1x4x8xf32, #tpu.memory_space<vmem>>, vector<1x1x4x8xf32>
    %3 = vector.shape_cast %2 : vector<1x1x4x8xf32> to vector<4x8xf32>
    %4 = vector.extract_strided_slice %3 {offsets = [0, 0], sizes = [4, 1], strides = [1, 1]} : vector<4x8xf32> to vector<4x1xf32>
    %5 = vector.broadcast %4 : vector<4x1xf32> to vector<4x256xf32>
    %6 = arith.addf %5, %1 : vector<4x256xf32>
    %cst = arith.constant 0.000000e+00 : f32
    %7 = vector.broadcast %cst : f32 to vector<4x256xf32>
    %8 = arith.maximumf %6, %7 : vector<4x256xf32>
    %c0_6 = arith.constant 0 : index
    %c0_7 = arith.constant 0 : index
    %9 = vector.load %arg8[%c0_6, %c0_7] : memref<4x2048xf32, #tpu.memory_space<vmem>>, vector<4x256xf32>
    tpu.vector_store %arg8[%c0_6, %c0_7], %8 {strides = array<i32>} : memref<4x2048xf32, #tpu.memory_space<vmem>>, vector<4x256xf32>,
    %10 = vector.extract_strided_slice %3 {offsets = [0, 1], sizes = [4, 1], strides = [1, 1]} : vector<4x8xf32> to vector<4x1xf32>
    %11 = vector.broadcast %10 : vector<4x1xf32> to vector<4x256xf32>
    %12 = arith.addf %11, %1 : vector<4x256xf32>
    %cst_8 = arith.constant 0.000000e+00 : f32
    %13 = vector.broadcast %cst_8 : f32 to vector<4x256xf32>
    %14 = arith.maximumf %12, %13 : vector<4x256xf32>
    %c0_9 = arith.constant 0 : index
    %c256 = arith.constant 256 : index
    %15 = vector.load %arg8[%c0_9, %c256] : memref<4x2048xf32, #tpu.memory_space<vmem>>, vector<4x256xf32>
    tpu.vector_store %arg8[%c0_9, %c256], %14 {strides = array<i32>} : memref<4x2048xf32, #tpu.memory_space<vmem>>, vector<4x256xf32>,
    %16 = vector.extract_strided_slice %3 {offsets = [0, 2], sizes = [4, 1], strides = [1, 1]} : vector<4x8xf32> to vector<4x1xf32>
    %17 = vector.broadcast %16 : vector<4x1xf32> to vector<4x256xf32>
    %18 = arith.addf %17, %1 : vector<4x256xf32>
    %cst_10 = arith.constant 0.000000e+00 : f32
    %19 = vector.broadcast %cst_10 : f32 to vector<4x256xf32>
    %20 = arith.maximumf %18, %19 : vector<4x256xf32>
    %c0_11 = arith.constant 0 : index
    %c512 = arith.constant 512 : index
    %21 = vector.load %arg8[%c0_11, %c512] : memref<4x2048xf32, #tpu.memory_space<vmem>>, vector<4x256xf32>
    tpu.vector_store %arg8[%c0_11, %c512], %20 {strides = array<i32>} : memref<4x2048xf32, #tpu.memory_space<vmem>>, vector<4x256xf32>,
    %22 = vector.extract_strided_slice %3 {offsets = [0, 3], sizes = [4, 1], strides = [1, 1]} : vector<4x8xf32> to vector<4x1xf32>
    %23 = vector.broadcast %22 : vector<4x1xf32> to vector<4x256xf32>
    %24 = arith.addf %23, %1 : vector<4x256xf32>
    %cst_12 = arith.constant 0.000000e+00 : f32
    %25 = vector.broadcast %cst_12 : f32 to vector<4x256xf32>
    %26 = arith.maximumf %24, %25 : vector<4x256xf32>
    %c0_13 = arith.constant 0 : index
    %c768 = arith.constant 768 : index
    %27 = vector.load %arg8[%c0_13, %c768] : memref<4x2048xf32, #tpu.memory_space<vmem>>, vector<4x256xf32>
    tpu.vector_store %arg8[%c0_13, %c768], %26 {strides = array<i32>} : memref<4x2048xf32, #tpu.memory_space<vmem>>, vector<4x256xf32>,
    %28 = vector.extract_strided_slice %3 {offsets = [0, 4], sizes = [4, 1], strides = [1, 1]} : vector<4x8xf32> to vector<4x1xf32>
    %29 = vector.broadcast %28 : vector<4x1xf32> to vector<4x256xf32>
    %30 = arith.addf %29, %1 : vector<4x256xf32>
    %cst_14 = arith.constant 0.000000e+00 : f32
    %31 = vector.broadcast %cst_14 : f32 to vector<4x256xf32>
    %32 = arith.maximumf %30, %31 : vector<4x256xf32>
    %c0_15 = arith.constant 0 : index
    %c1024 = arith.constant 1024 : index
    %33 = vector.load %arg8[%c0_15, %c1024] : memref<4x2048xf32, #tpu.memory_space<vmem>>, vector<4x256xf32>
    tpu.vector_store %arg8[%c0_15, %c1024], %32 {strides = array<i32>} : memref<4x2048xf32, #tpu.memory_space<vmem>>, vector<4x256xf32>,
    %34 = vector.extract_strided_slice %3 {offsets = [0, 5], sizes = [4, 1], strides = [1, 1]} : vector<4x8xf32> to vector<4x1xf32>
    %35 = vector.broadcast %34 : vector<4x1xf32> to vector<4x256xf32>
    %36 = arith.addf %35, %1 : vector<4x256xf32>
    %cst_16 = arith.constant 0.000000e+00 : f32
    %37 = vector.broadcast %cst_16 : f32 to vector<4x256xf32>
    %38 = arith.maximumf %36, %37 : vector<4x256xf32>
    %c0_17 = arith.constant 0 : index
    %c1280 = arith.constant 1280 : index
    %39 = vector.load %arg8[%c0_17, %c1280] : memref<4x2048xf32, #tpu.memory_space<vmem>>, vector<4x256xf32>
    tpu.vector_store %arg8[%c0_17, %c1280], %38 {strides = array<i32>} : memref<4x2048xf32, #tpu.memory_space<vmem>>, vector<4x256xf32>,
    %40 = vector.extract_strided_slice %3 {offsets = [0, 6], sizes = [4, 1], strides = [1, 1]} : vector<4x8xf32> to vector<4x1xf32>
    %41 = vector.broadcast %40 : vector<4x1xf32> to vector<4x256xf32>
    %42 = arith.addf %41, %1 : vector<4x256xf32>
    %cst_18 = arith.constant 0.000000e+00 : f32
    %43 = vector.broadcast %cst_18 : f32 to vector<4x256xf32>
    %44 = arith.maximumf %42, %43 : vector<4x256xf32>
    %c0_19 = arith.constant 0 : index
    %c1536 = arith.constant 1536 : index
    %45 = vector.load %arg8[%c0_19, %c1536] : memref<4x2048xf32, #tpu.memory_space<vmem>>, vector<4x256xf32>
    tpu.vector_store %arg8[%c0_19, %c1536], %44 {strides = array<i32>} : memref<4x2048xf32, #tpu.memory_space<vmem>>, vector<4x256xf32>,
    %46 = vector.extract_strided_slice %3 {offsets = [0, 7], sizes = [4, 1], strides = [1, 1]} : vector<4x8xf32> to vector<4x1xf32>
    %47 = vector.broadcast %46 : vector<4x1xf32> to vector<4x256xf32>
    %48 = arith.addf %47, %1 : vector<4x256xf32>
    %cst_20 = arith.constant 0.000000e+00 : f32
    %49 = vector.broadcast %cst_20 : f32 to vector<4x256xf32>
    %50 = arith.maximumf %48, %49 : vector<4x256xf32>
    %c0_21 = arith.constant 0 : index
    %c1792 = arith.constant 1792 : index
    %51 = vector.load %arg8[%c0_21, %c1792] : memref<4x2048xf32, #tpu.memory_space<vmem>>, vector<4x256xf32>
    tpu.vector_store %arg8[%c0_21, %c1792], %50 {strides = array<i32>} : memref<4x2048xf32, #tpu.memory_space<vmem>>, vector<4x256xf32>,
    %c0_22 = arith.constant 0 : index
    %c0_23 = arith.constant 0 : index
    %52 = vector.load %arg5[%c0_22, %c0_23] : memref<8x4xf32, #tpu.memory_space<vmem>>, vector<8x4xf32>
    %c0_24 = arith.constant 0 : index
    %c0_25 = arith.constant 0 : index
    %53 = vector.load %arg8[%c0_24, %c0_25] : memref<4x2048xf32, #tpu.memory_space<vmem>>, vector<4x2048xf32>
    %cst_26 = arith.constant dense<0.000000e+00> : vector<8x2048xf32>
    %54 = tpu.matmul %52, %53, %cst_26 {dimension_numbers = #tpu.dot_dimension_numbers<[1], [0], [0], [1], [0, 0, 1, 1], [], []>} : vector<8x4xf32>, vector<4x2048xf32>, vector<8x2048xf32> -> vector<8x2048xf32>
    %c0_27 = arith.constant 0 : index
    %c0_28 = arith.constant 0 : index
    %55 = vector.load %arg6[%c0_27, %c0_28] : memref<8x1xf32, #tpu.memory_space<vmem>>, vector<8x1xf32>
    %56 = vector.broadcast %55 : vector<8x1xf32> to vector<8x2048xf32>
    %57 = arith.addf %54, %56 : vector<8x2048xf32>
    %cst_29 = arith.constant 5.000000e-01 : f32
    %58 = vector.broadcast %cst_29 : f32 to vector<8x2048xf32>
    %59 = arith.mulf %58, %57 : vector<8x2048xf32>
    %60 = math.tanh %59 : vector<8x2048xf32>
    %cst_30 = arith.constant 1.000000e+00 : f32
    %61 = vector.broadcast %cst_30 : f32 to vector<8x2048xf32>
    %62 = arith.addf %61, %60 : vector<8x2048xf32>
    %cst_31 = arith.constant 5.000000e-01 : f32
    %63 = vector.broadcast %cst_31 : f32 to vector<8x2048xf32>
    %64 = arith.mulf %63, %62 : vector<8x2048xf32>
    %c0_32 = arith.constant 0 : index
    %c0_33 = arith.constant 0 : index
    %c0_34 = arith.constant 0 : index
    %65 = vector.load %arg2[%c0_32, %c0_33, %c0_34] : memref<1x8x2048xf32, #tpu.memory_space<vmem>>, vector<1x8x2048xf32>
    %66 = vector.shape_cast %65 : vector<1x8x2048xf32> to vector<8x2048xf32>
    %67 = arith.mulf %66, %64 : vector<8x2048xf32>
    %c0_35 = arith.constant 0 : index
    %c0_36 = arith.constant 0 : index
    %c0_37 = arith.constant 0 : index
    %68 = vector.load %arg7[%c0_35, %c0_36, %c0_37] : memref<1x8x2048xf32, #tpu.memory_space<vmem>>, vector<1x8x2048xf32>
    %69 = vector.shape_cast %68 : vector<1x8x2048xf32> to vector<8x2048xf32>
    %70 = vector.shape_cast %67 : vector<8x2048xf32> to vector<1x8x2048xf32>
    tpu.vector_store %arg7[%c0_35, %c0_36, %c0_37], %70 {strides = array<i32>} : memref<1x8x2048xf32, #tpu.memory_space<vmem>>, vector<1x8x2048xf32>,
    return
  }
  func.func @transform_0(%arg0: i32, %arg1: i32) -> (i32, i32, i32) {
    %c0_i32 = arith.constant 0 : i32
    %c0_i32_0 = arith.constant 0 : i32
    return %arg0, %c0_i32, %arg1 : i32, i32, i32
  }
  func.func @transform_1(%arg0: i32, %arg1: i32) -> (i32, i32, i32, i32) {
    %c0_i32 = arith.constant 0 : i32
    %c0_i32_0 = arith.constant 0 : i32
    %c0_i32_1 = arith.constant 0 : i32
    return %arg0, %arg1, %c0_i32, %c0_i32_0 : i32, i32, i32, i32
  }
  func.func @transform_2(%arg0: i32, %arg1: i32) -> (i32, i32, i32) {
    %c0_i32 = arith.constant 0 : i32
    %c0_i32_0 = arith.constant 0 : i32
    %c0_i32_1 = arith.constant 0 : i32
    return %arg0, %c0_i32, %c0_i32_0 : i32, i32, i32
  }
  func.func @transform_3(%arg0: i32, %arg1: i32) -> (i32, i32) {
    %c0_i32 = arith.constant 0 : i32
    %c0_i32_0 = arith.constant 0 : i32
    %c0_i32_1 = arith.constant 0 : i32
    return %c0_i32, %c0_i32_0 : i32, i32
  }
  func.func @transform_4(%arg0: i32, %arg1: i32) -> (i32, i32) {
    %c0_i32 = arith.constant 0 : i32
    %c0_i32_0 = arith.constant 0 : i32
    %c0_i32_1 = arith.constant 0 : i32
    return %c0_i32, %c0_i32_0 : i32, i32
  }
  func.func @transform_5(%arg0: i32, %arg1: i32) -> (i32, i32, i32) {
    %c0_i32 = arith.constant 0 : i32
    %c0_i32_0 = arith.constant 0 : i32
    return %arg0, %c0_i32, %arg1 : i32, i32, i32
  }
}

</mosaic_0001>

<llo_original>
// kernel: project_excite_pallas.2
$region0: #{project_excite_pallas.2}
  #allocation0 [shape = 'u32[]', space=smem, size = 0x4, offset = 0x4, fixed_abs, tag = 'smem constant byte address 0x4 - core index']
  #allocation1 [shape = 'u32[144,128]{1,0:T(1,128)}', space=vmem, size = 0x12000, scoped, tag = 'internal scratch']
  %s0 = inlined_call_operand.vmem [shape: f32[2,8,8,256], index: 0, kind: input, shape index: {}]
  %s1 = inlined_call_operand.vmem [shape: f32[256,16], index: 1, kind: input, shape index: {}]
  %s2 = inlined_call_operand.vmem [shape: f32[256,16], index: 2, kind: input, shape index: {}]
  %s3 = inlined_call_operand.vmem [shape: f32[2,8,8], index: 3, kind: output, shape index: {0}]
  %s4 = inlined_call_operand.vmem [shape: f32[2,8,16], index: 4, kind: output, shape index: {1}]
  %s5 = inlined_call_operand.vmem [shape: f32[2,8,16], index: 5, kind: output, shape index: {2}]
  %6 = xla_tuple %s3, %s4, %s5
  %s7 = sld [smem:[#allocation0]]
  $region61: #{project_excite_pallas.2} parent=0
    _
  %s9 = ssub.s32 1, %s7
  %s10 = scalar_select 0, %s9, %s7
  loop: start=0, step=1, limit=4
  $region2: #{project_excite_pallas.2} parent=0 // loop_pre_header
    _
  $region3: #{project_excite_pallas.2} parent=0 // loop_header
    %s12 = sphi 0, %s16
    %p13 = scmp.ge.s32.totalorder %s12, 4
    %s19 = sphi 0, %s31
    %s20 = sphi 0, %s27
    %s21 = sphi 0, %s19
    %s22 = sphi 0, %s20
    %s23 = sphi 0, %s21
    %s24 = sphi 0, %s22
    %s36 = sphi 0, %s38
    %s39 = sphi 0, %s36
    %s40 = sphi 0, %s39
    %s56 = sphi 0, %s40
    %s60 = sphi 0, %s60
    %s62 = sphi 0, %s60
    %s63 = sphi 0, %s62
    %s77 = sphi 0, %s63
    %s81 = sphi 0, %s81
    %s83 = sphi 0, %s81
    %s84 = sphi 0, %s83
    %s98 = sphi 0, %s84
    %s106 = sphi 0, %s108
    %s109 = sphi 0, %s106
    %s110 = sphi 0, %s109
    %s126 = sphi 0, %s110
    %s134 = sphi 0, %s136
    %s137 = sphi 0, %s134
    %s138 = sphi 0, %s137
    %s154 = sphi 0, %s138
    %s162 = sphi 0, %s164
    %s165 = sphi 0, %s162
    %s166 = sphi 0, %s165
    %s182 = sphi 0, %s166
  $region4: #{project_excite_pallas.2} parent=0 // loop_header_branch
    %15 = sbr.rel (%p13) target = $region8
  $region5: #{project_excite_pallas.2} parent=0 // loop_body
    %s17 = ssub.s32 %s12, 1
    %s18 = ssub.s32 %s12, 2
    %s25 = sadd.s32 1, %s20
    %p26 = scmp.ge.s32.totalorder %s25, 1
    %s27 = scalar_select %p26, 0, %s25
    %s28 = sadd.s32 1, %s19
    %s29 = scalar_select %p26, %s28, %s19
    %p30 = scmp.ge.s32.totalorder %s29, 2
    %s31 = scalar_select %p30, 0, %s29
    %s32 = ssub.s32 %s19, %s31
    %s33 = ssub.s32 %s20, %s27
    %s34 = sor.u32 %s32, %s33
    %p35 = scmp.eq.s32.totalorder %s34, 0
    %s37 = sadd.s32 %s36, 1
    %s38 = scalar_select %p35, %s36, %s37
    %p41 = pneg %p35
    %p42 = scmp.eq.s32.totalorder %s12, 1
    %p43 = por %p41, %p42
    %p44 = scmp.ne.s32.totalorder %s36, %s39
    %p45 = scmp.eq.s32.totalorder %s12, 0
    %p46 = por %p44, %p45
    %p47 = scmp.ne.s32.totalorder %s36, %s39
    %p48 = scmp.eq.s32.totalorder %s17, 1
    %p49 = por %p47, %p48
    %p50 = scmp.ne.s32.totalorder %s39, %s40
    %p51 = scmp.eq.s32.totalorder %s17, 0
    %p52 = por %p50, %p51
    %p53 = scmp.ne.s32.totalorder %s39, %s40
    %p54 = scmp.eq.s32.totalorder %s18, 1
    %p55 = por %p53, %p54
    %p57 = scmp.ne.s32.totalorder %s40, %s56
    %p58 = scmp.eq.s32.totalorder %s18, 0
    %p59 = por %p57, %p58
    %s61 = sadd.s32 %s60, 1
    %p64 = scmp.eq.s32.totalorder %s12, 1
    %p65 = scmp.ne.s32.totalorder %s60, %s62
    %p66 = scmp.eq.s32.totalorder %s12, 0
    %p67 = por %p65, %p66
    %p68 = scmp.ne.s32.totalorder %s60, %s62
    %p69 = scmp.eq.s32.totalorder %s17, 1
    %p70 = por %p68, %p69
    %p71 = scmp.ne.s32.totalorder %s62, %s63
    %p72 = scmp.eq.s32.totalorder %s17, 0
    %p73 = por %p71, %p72
    %p74 = scmp.ne.s32.totalorder %s62, %s63
    %p75 = scmp.eq.s32.totalorder %s18, 1
    %p76 = por %p74, %p75
    %p78 = scmp.ne.s32.totalorder %s63, %s77
    %p79 = scmp.eq.s32.totalorder %s18, 0
    %p80 = por %p78, %p79
    %s82 = sadd.s32 %s81, 1
    %p85 = scmp.eq.s32.totalorder %s12, 1
    %p86 = scmp.ne.s32.totalorder %s81, %s83
    %p87 = scmp.eq.s32.totalorder %s12, 0
    %p88 = por %p86, %p87
    %p89 = scmp.ne.s32.totalorder %s81, %s83
    %p90 = scmp.eq.s32.totalorder %s17, 1
    %p91 = por %p89, %p90
    %p92 = scmp.ne.s32.totalorder %s83, %s84
    %p93 = scmp.eq.s32.totalorder %s17, 0
    %p94 = por %p92, %p93
    %p95 = scmp.ne.s32.totalorder %s83, %s84
    %p96 = scmp.eq.s32.totalorder %s18, 1
    %p97 = por %p95, %p96
    %p99 = scmp.ne.s32.totalorder %s84, %s98
    %p100 = scmp.eq.s32.totalorder %s18, 0
    %p101 = por %p99, %p100
    %s102 = ssub.s32 %s19, %s31
    %s103 = ssub.s32 %s20, %s27
    %s104 = sor.u32 %s102, %s103
    %p105 = scmp.eq.s32.totalorder %s104, 0
    %s107 = sadd.s32 %s106, 1
    %s108 = scalar_select %p105, %s106, %s107
    %p111 = pneg %p105
    %p112 = scmp.eq.s32.totalorder %s12, 1
    %p113 = por %p111, %p112
    %p114 = scmp.ne.s32.totalorder %s106, %s109
    %p115 = scmp.eq.s32.totalorder %s12, 0
    %p116 = por %p114, %p115
    %p117 = scmp.ne.s32.totalorder %s106, %s109
    %p118 = scmp.eq.s32.totalorder %s17, 1
    %p119 = por %p117, %p118
    %p120 = scmp.ne.s32.totalorder %s109, %s110
    %p121 = scmp.eq.s32.totalorder %s17, 0
    %p122 = por %p120, %p121
    %p123 = scmp.ne.s32.totalorder %s109, %s110
    %p124 = scmp.eq.s32.totalorder %s18, 1
    %p125 = por %p123, %p124
    %p127 = scmp.ne.s32.totalorder %s110, %s126
    %p128 = scmp.eq.s32.totalorder %s18, 0
    %p129 = por %p127, %p128
    %s130 = ssub.s32 %s19, %s31
    %s131 = ssub.s32 %s20, %s27
    %s132 = sor.u32 %s130, %s131
    %p133 = scmp.eq.s32.totalorder %s132, 0
    %s135 = sadd.s32 %s134, 1
    %s136 = scalar_select %p133, %s134, %s135
    %p139 = pneg %p133
    %p140 = scmp.eq.s32.totalorder %s12, 1
    %p141 = por %p139, %p140
    %p142 = scmp.ne.s32.totalorder %s134, %s137
    %p143 = scmp.eq.s32.totalorder %s12, 0
    %p144 = por %p142, %p143
    %p145 = scmp.ne.s32.totalorder %s134, %s137
    %p146 = scmp.eq.s32.totalorder %s17, 1
    %p147 = por %p145, %p146
    %p148 = scmp.ne.s32.totalorder %s137, %s138
    %p149 = scmp.eq.s32.totalorder %s17, 0
    %p150 = por %p148, %p149
    %p151 = scmp.ne.s32.totalorder %s137, %s138
    %p152 = scmp.eq.s32.totalorder %s18, 1
    %p153 = por %p151, %p152
    %p155 = scmp.ne.s32.totalorder %s138, %s154
    %p156 = scmp.eq.s32.totalorder %s18, 0
    %p157 = por %p155, %p156
    %s158 = ssub.s32 %s19, %s31
    %s159 = ssub.s32 %s20, %s27
    %s160 = sor.u32 %s158, %s159
    %p161 = scmp.eq.s32.totalorder %s160, 0
    %s163 = sadd.s32 %s162, 1
    %s164 = scalar_select %p161, %s162, %s163
    %p167 = pneg %p161
    %p168 = scmp.eq.s32.totalorder %s12, 1
    %p169 = por %p167, %p168
    %p170 = scmp.ne.s32.totalorder %s162, %s165
    %p171 = scmp.eq.s32.totalorder %s12, 0
    %p172 = por %p170, %p171
    %p173 = scmp.ne.s32.totalorder %s162, %s165
    %p174 = scmp.eq.s32.totalorder %s17, 1
    %p175 = por %p173, %p174
    %p176 = scmp.ne.s32.totalorder %s165, %s166
    %p177 = scmp.eq.s32.totalorder %s17, 0
    %p178 = por %p176, %p177
    %p179 = scmp.ne.s32.totalorder %s165, %s166
    %p180 = scmp.eq.s32.totalorder %s18, 1
    %p181 = por %p179, %p180
    %p183 = scmp.ne.s32.totalorder %s166, %s182
    %p184 = scmp.eq.s32.totalorder %s18, 0
    %p185 = por %p183, %p184
    %p186 = scmp.le.s32.totalorder 1, %s12
    %p187 = scmp.lt.s32.totalorder %s12, 3
    %p188 = pnand %p186, %p187
    %p189 = pneg %p188
    // Predicated region
    $region9: #{project_excite_pallas.2} parent=5 // pred_check
      _
    $region10: #{project_excite_pallas.2} parent=5 // pred_check_branch
      %191 = sbr.rel (%p188) target = $region12
    $region11: #{project_excite_pallas.2} parent=5 // pred_region
      %s192 = ssub.s32 %s12, 1
      // Predicated region
      $region13: #{project_excite_pallas.2} parent=11 // pred_check
        %p193 = pneg %p73
      $region14: #{project_excite_pallas.2} parent=11 // pred_check_branch
        %195 = sbr.rel (%p193) target = $region16
      $region15: #{project_excite_pallas.2} parent=11 // pred_region
        _
      $region16: #{project_excite_pallas.2} parent=11 // pred_fallthru
        _
      // Predicated region
      $region17: #{project_excite_pallas.2} parent=11 // pred_check
        %p196 = pneg %p94
      $region18: #{project_excite_pallas.2} parent=11 // pred_check_branch
        %198 = sbr.rel (%p196) target = $region20
      $region19: #{project_excite_pallas.2} parent=11 // pred_region
        _
      $region20: #{project_excite_pallas.2} parent=11 // pred_fallthru
        _
    $region12: #{project_excite_pallas.2} parent=5 // pred_fallthru
      _
    %p199 = scmp.lt.s32.totalorder %s12, 2
    // Predicated region
    $region21: #{project_excite_pallas.2} parent=5 // pred_check
      %p200 = pneg %p199
    $region22: #{project_excite_pallas.2} parent=5 // pred_check_branch
      %202 = sbr.rel (%p200) target = $region24
    $region23: #{project_excite_pallas.2} parent=5 // pred_region
      // Predicated region
      $region25: #{project_excite_pallas.2} parent=23 // pred_check
        %p203 = pneg %p46
      $region26: #{project_excite_pallas.2} parent=23 // pred_check_branch
        %205 = sbr.rel (%p203) target = $region28
      $region27: #{project_excite_pallas.2} parent=23 // pred_region
        %s206 = smul.u32 8, %s20
        %p207 = scmp.lt.s32.totalorder %s19, 1
        %s208 = scalar_select %p207, %s19, 1
        %p209 = scmp.lt.s32.totalorder %s206, 7
        %s210 = scalar_select %p209, %s206, 7
        %s211 = smul.addr %s210, 2
        %s212 = smul.addr %s208, 16
        %s213 = sadd.s32 %s211, %s212
        %s214 = smul.addr %s213, 8
        %s215 = scalar_lea.vmem %s0, %s214
        %s216 = smul.u32 8, %s20
      $region28: #{project_excite_pallas.2} parent=23 // pred_fallthru
        _
    $region24: #{project_excite_pallas.2} parent=5 // pred_fallthru
      _
    %p217 = scmp.le.s32.totalorder 1, %s12
    %p218 = scmp.lt.s32.totalorder %s12, 3
    %p219 = pnand %p217, %p218
    %p220 = pneg %p219
    // Predicated region
    $region29: #{project_excite_pallas.2} parent=5 // pred_check
      _
    $region30: #{project_excite_pallas.2} parent=5 // pred_check_branch
      %222 = sbr.rel (%p219) target = $region32
    $region31: #{project_excite_pallas.2} parent=5 // pred_region
      %s223 = ssub.s32 %s12, 1
      %s224 = smul.u32 8, %s22
      %p225 = scmp.lt.s32.totalorder %s21, 1
      %s226 = scalar_select %p225, %s21, 1
      %p227 = scmp.lt.s32.totalorder %s224, 7
      %s228 = scalar_select %p227, %s224, 7
      %s229 = smul.addr %s228, 2
      %s230 = smul.addr %s226, 16
      %s231 = sadd.s32 %s229, %s230
      %s232 = smul.addr %s231, 8
      %s233 = scalar_lea.vmem %s0, %s232
      %p234 = pneg %p52
      %p235 = pneg %p49
      %p236 = pneg %p73
      %p237 = pneg %p70
      %p238 = pneg %p94
      %p239 = pneg %p91
      %p240 = pneg %p122
      %p241 = pneg %p119
      %p242 = scmp.lt.s32.totalorder %s21, 1
      %s243 = scalar_select %p242, %s21, 1
      %p244 = scmp.lt.s32.totalorder %s22, 0
      %s245 = scalar_select %p244, %s22, 0
      %s246 = sadd.s32 %s245, %s243
      %s247 = smul.addr %s246, 8
      %s248 = scalar_lea.vmem %s3, %s247
      %p249 = pneg %p150
      %p250 = pneg %p147
      %p251 = scmp.lt.s32.totalorder %s21, 1
      %s252 = scalar_select %p251, %s21, 1
      %p253 = scmp.lt.s32.totalorder %s22, 0
      %s254 = scalar_select %p253, %s22, 0
      %s255 = sadd.s32 %s254, %s252
      %s256 = smul.addr %s255, 8
      %s257 = scalar_lea.vmem %s4, %s256
      %p258 = pneg %p178
      %p259 = pneg %p175
      %p260 = scmp.lt.s32.totalorder %s21, 1
      %s261 = scalar_select %p260, %s21, 1
      %p262 = scmp.lt.s32.totalorder %s22, 0
      %s263 = scalar_select %p262, %s22, 0
      %s264 = sadd.s32 %s263, %s261
      %s265 = smul.addr %s264, 8
      %s266 = scalar_lea.vmem %s5, %s265
      %s267 = smul.u32 8, %s22
      %p268 = scmp.lt.s32.totalorder %s21, 1
      %s269 = scalar_select %p268, %s21, 1
      %p270 = scmp.lt.s32.totalorder %s267, 7
      %s271 = scalar_select %p270, %s267, 7
      %s272 = smul.addr %s271, 2
      %s273 = smul.addr %s269, 16
      %s274 = sadd.s32 %s272, %s273
      %s275 = smul.addr %s274, 8
      %s276 = scalar_lea.vmem %s0, %s275
      %s277 = smul.u32 8, %s22
      %p278 = scmp.lt.s32.totalorder %s21, 1
      %s279 = scalar_select %p278, %s21, 1
      %p280 = scmp.lt.s32.totalorder %s22, 0
      %s281 = scalar_select %p280, %s22, 0
      %s282 = sadd.s32 %s281, %s279
      %s283 = smul.addr %s282, 8
      %s284 = scalar_lea.vmem %s3, %s283
      %p285 = scmp.lt.s32.totalorder %s21, 1
      %s286 = scalar_select %p285, %s21, 1
      %p287 = scmp.lt.s32.totalorder %s22, 0
      %s288 = scalar_select %p287, %s22, 0
      %s289 = sadd.s32 %s288, %s286
      %s290 = smul.addr %s289, 8
      %s291 = scalar_lea.vmem %s4, %s290
      %p292 = scmp.lt.s32.totalorder %s21, 1
      %s293 = scalar_select %p292, %s21, 1
      %p294 = scmp.lt.s32.totalorder %s22, 0
      %s295 = scalar_select %p294, %s22, 0
      %s296 = sadd.s32 %s295, %s293
      %s297 = smul.addr %s296, 8
      %s298 = scalar_lea.vmem %s5, %s297
      %v299 = vld [vmem:[%s276] sm:$0xff]
      %v300 = vld [vmem:[%s276 + $0x8] sm:$0xff]
      %v301 = vld [vmem:[%s276 + $0x10] sm:$0xff]
      %v302 = vld [vmem:[%s276 + $0x18] sm:$0xff]
      %v303 = vld [vmem:[%s276 + $0x20] sm:$0xff]
      %v304 = vld [vmem:[%s276 + $0x28] sm:$0xff]
      %v305 = vld [vmem:[%s276 + $0x30] sm:$0xff]
      %v306 = vld [vmem:[%s276 + $0x38] sm:$0xff]
      %v307 = vld [vmem:[%s276 + $0x40] sm:$0xff]
      %v308 = vld [vmem:[%s276 + $0x48] sm:$0xff]
      %v309 = vld [vmem:[%s276 + $0x50] sm:$0xff]
      %v310 = vld [vmem:[%s276 + $0x58] sm:$0xff]
      %v311 = vld [vmem:[%s276 + $0x60] sm:$0xff]
      %v312 = vld [vmem:[%s276 + $0x68] sm:$0xff]
      %v313 = vld [vmem:[%s276 + $0x70] sm:$0xff]
      %v314 = vld [vmem:[%s276 + $0x78] sm:$0xff]
      %v315 = vadd.f32 %v299, %v300
      %316 = vadd.xlane.f32.xlu0 %v315
      %v317 = vpop.xlane.xlu0 %316
      %v318 = vadd.f32 %v301, %v302
      %319 = vadd.xlane.f32.xlu0 %v318
      %v320 = vpop.xlane.xlu0 %319
      %v321 = vadd.f32 %v303, %v304
      %322 = vadd.xlane.f32.xlu0 %v321
      %v323 = vpop.xlane.xlu0 %322
      %v324 = vadd.f32 %v305, %v306
      %325 = vadd.xlane.f32.xlu0 %v324
      %v326 = vpop.xlane.xlu0 %325
      %v327 = vadd.f32 %v307, %v308
      %328 = vadd.xlane.f32.xlu0 %v327
      %v329 = vpop.xlane.xlu0 %328
      %v330 = vadd.f32 %v309, %v310
      %331 = vadd.xlane.f32.xlu0 %v330
      %v332 = vpop.xlane.xlu0 %331
      %v333 = vadd.f32 %v311, %v312
      %334 = vadd.xlane.f32.xlu0 %v333
      %v335 = vpop.xlane.xlu0 %334
      %v336 = vadd.f32 %v313, %v314
      %337 = vadd.xlane.f32.xlu0 %v336
      %v338 = vpop.xlane.xlu0 %337
      %v339 = vmul.f32 %v317, 0.00390625
      %v340 = vmul.f32 %v320, 0.00390625
      %v341 = vmul.f32 %v323, 0.00390625
      %v342 = vmul.f32 %v326, 0.00390625
      %v343 = vmul.f32 %v329, 0.00390625
      %v344 = vmul.f32 %v332, 0.00390625
      %v345 = vmul.f32 %v335, 0.00390625
      %v346 = vmul.f32 %v338, 0.00390625
      %v355 = vlaneseq
      %v356 = vand.u32 %v355, 127
      %v357 = vlaneseq
      %v358 = vshrl.u32 %v357, 7
      %v359 = vsub.s32 %v356, %v358
      %v360 = vrot.slane %v339, %v359
      %v361 = vlaneseq
      %v362 = vshrl.u32 %v361, 7
      %v363 = vsub.s32 %v356, %v362
      %v364 = vrot.slane %v340, %v363
      %v365 = vlaneseq
      %v366 = vshrl.u32 %v365, 7
      %v367 = vsub.s32 %v356, %v366
      %v368 = vrot.slane %v341, %v367
      %v369 = vlaneseq
      %v370 = vshrl.u32 %v369, 7
      %v371 = vsub.s32 %v356, %v370
      %v372 = vrot.slane %v342, %v371
      %v373 = vlaneseq
      %v374 = vshrl.u32 %v373, 7
      %v375 = vsub.s32 %v356, %v374
      %v376 = vrot.slane %v343, %v375
      %v377 = vlaneseq
      %v378 = vshrl.u32 %v377, 7
      %v379 = vsub.s32 %v356, %v378
      %v380 = vrot.slane %v344, %v379
      %v381 = vlaneseq
      %v382 = vshrl.u32 %v381, 7
      %v383 = vsub.s32 %v356, %v382
      %v384 = vrot.slane %v345, %v383
      %v385 = vlaneseq
      %v386 = vshrl.u32 %v385, 7
      %v387 = vsub.s32 %v356, %v386
      %v388 = vrot.slane %v346, %v387
      %vm389 = vcmask 1041409
      %v390 = vsel %vm389, %v364, %v360
      %vm391 = vcmask 1042434
      %v392 = vsel %vm391, %v368, %v390
      %vm393 = vcmask 1043459
      %v394 = vsel %vm393, %v372, %v392
      %vm395 = vcmask 1044484
      %v396 = vsel %vm395, %v376, %v394
      %vm397 = vcmask 1045509
      %v398 = vsel %vm397, %v380, %v396
      %vm399 = vcmask 1046534
      %v400 = vsel %vm399, %v384, %v398
      %vm401 = vcmask 1047559
      %v402 = vsel %vm401, %v388, %v400
      %vm404 = vcmask 64512
      %405 = vst.msk [vmem:[%s284] sm:$0xff] %vm404, %v402
      %v406 = vrot.slane %v299, 4
      %v407 = vadd.f32 %v299, %v406
      %v408 = vrot.slane %v407, 2
      %v409 = vadd.f32 %v407, %v408
      %v410 = vrot.slane %v409, 1
      %v411 = vadd.f32 %v409, %v410
      %v412 = vrot.slane %v300, 4
      %v413 = vadd.f32 %v300, %v412
      %v414 = vrot.slane %v413, 2
      %v415 = vadd.f32 %v413, %v414
      %v416 = vrot.slane %v415, 1
      %v417 = vadd.f32 %v415, %v416
      %v418 = vrot.slane %v301, 4
      %v419 = vadd.f32 %v301, %v418
      %v420 = vrot.slane %v419, 2
      %v421 = vadd.f32 %v419, %v420
      %v422 = vrot.slane %v421, 1
      %v423 = vadd.f32 %v421, %v422
      %v424 = vrot.slane %v302, 4
      %v425 = vadd.f32 %v302, %v424
      %v426 = vrot.slane %v425, 2
      %v427 = vadd.f32 %v425, %v426
      %v428 = vrot.slane %v427, 1
      %v429 = vadd.f32 %v427, %v428
      %v430 = vrot.slane %v303, 4
      %v431 = vadd.f32 %v303, %v430
      %v432 = vrot.slane %v431, 2
      %v433 = vadd.f32 %v431, %v432
      %v434 = vrot.slane %v433, 1
      %v435 = vadd.f32 %v433, %v434
      %v436 = vrot.slane %v304, 4
      %v437 = vadd.f32 %v304, %v436
      %v438 = vrot.slane %v437, 2
      %v439 = vadd.f32 %v437, %v438
      %v440 = vrot.slane %v439, 1
      %v441 = vadd.f32 %v439, %v440
      %v442 = vrot.slane %v305, 4
      %v443 = vadd.f32 %v305, %v442
      %v444 = vrot.slane %v443, 2
      %v445 = vadd.f32 %v443, %v444
      %v446 = vrot.slane %v445, 1
      %v447 = vadd.f32 %v445, %v446
      %v448 = vrot.slane %v306, 4
      %v449 = vadd.f32 %v306, %v448
      %v450 = vrot.slane %v449, 2
      %v451 = vadd.f32 %v449, %v450
      %v452 = vrot.slane %v451, 1
      %v453 = vadd.f32 %v451, %v452
      %v454 = vrot.slane %v307, 4
      %v455 = vadd.f32 %v307, %v454
      %v456 = vrot.slane %v455, 2
      %v457 = vadd.f32 %v455, %v456
      %v458 = vrot.slane %v457, 1
      %v459 = vadd.f32 %v457, %v458
      %v460 = vrot.slane %v308, 4
      %v461 = vadd.f32 %v308, %v460
      %v462 = vrot.slane %v461, 2
      %v463 = vadd.f32 %v461, %v462
      %v464 = vrot.slane %v463, 1
      %v465 = vadd.f32 %v463, %v464
      %v466 = vrot.slane %v309, 4
      %v467 = vadd.f32 %v309, %v466
      %v468 = vrot.slane %v467, 2
      %v469 = vadd.f32 %v467, %v468
      %v470 = vrot.slane %v469, 1
      %v471 = vadd.f32 %v469, %v470
      %v472 = vrot.slane %v310, 4
      %v473 = vadd.f32 %v310, %v472
      %v474 = vrot.slane %v473, 2
      %v475 = vadd.f32 %v473, %v474
      %v476 = vrot.slane %v475, 1
      %v477 = vadd.f32 %v475, %v476
      %v478 = vrot.slane %v311, 4
      %v479 = vadd.f32 %v311, %v478
      %v480 = vrot.slane %v479, 2
      %v481 = vadd.f32 %v479, %v480
      %v482 = vrot.slane %v481, 1
      %v483 = vadd.f32 %v481, %v482
      %v484 = vrot.slane %v312, 4
      %v485 = vadd.f32 %v312, %v484
      %v486 = vrot.slane %v485, 2
      %v487 = vadd.f32 %v485, %v486
      %v488 = vrot.slane %v487, 1
      %v489 = vadd.f32 %v487, %v488
      %v490 = vrot.slane %v313, 4
      %v491 = vadd.f32 %v313, %v490
      %v492 = vrot.slane %v491, 2
      %v493 = vadd.f32 %v491, %v492
      %v494 = vrot.slane %v493, 1
      %v495 = vadd.f32 %v493, %v494
      %v496 = vrot.slane %v314, 4
      %v497 = vadd.f32 %v314, %v496
      %v498 = vrot.slane %v497, 2
      %v499 = vadd.f32 %v497, %v498
      %v500 = vrot.slane %v499, 1
      %v501 = vadd.f32 %v499, %v500
      %v502 = vld [vmem:[%s1] sm:$0xff]
      %v503 = vld [vmem:[%s1 + $0x8] sm:$0xff]
      %v504 = vld [vmem:[%s1 + $0x10] sm:$0xff]
      %v505 = vld [vmem:[%s1 + $0x18] sm:$0xff]
      %v506 = vld [vmem:[%s1 + $0x20] sm:$0xff]
      %v507 = vld [vmem:[%s1 + $0x28] sm:$0xff]
      %v508 = vld [vmem:[%s1 + $0x30] sm:$0xff]
      %v509 = vld [vmem:[%s1 + $0x38] sm:$0xff]
      %v510 = vld [vmem:[%s1 + $0x40] sm:$0xff]
      %v511 = vld [vmem:[%s1 + $0x48] sm:$0xff]
      %v512 = vld [vmem:[%s1 + $0x50] sm:$0xff]
      %v513 = vld [vmem:[%s1 + $0x58] sm:$0xff]
      %v514 = vld [vmem:[%s1 + $0x60] sm:$0xff]
      %v515 = vld [vmem:[%s1 + $0x68] sm:$0xff]
      %v516 = vld [vmem:[%s1 + $0x70] sm:$0xff]
      %v517 = vld [vmem:[%s1 + $0x78] sm:$0xff]
      %v518 = vld [vmem:[%s1 + $0x80] sm:$0xff]
      %v519 = vld [vmem:[%s1 + $0x88] sm:$0xff]
      %v520 = vld [vmem:[%s1 + $0x90] sm:$0xff]
      %v521 = vld [vmem:[%s1 + $0x98] sm:$0xff]
      %v522 = vld [vmem:[%s1 + $0xa0] sm:$0xff]
      %v523 = vld [vmem:[%s1 + $0xa8] sm:$0xff]
      %v524 = vld [vmem:[%s1 + $0xb0] sm:$0xff]
      %v525 = vld [vmem:[%s1 + $0xb8] sm:$0xff]
      %v526 = vld [vmem:[%s1 + $0xc0] sm:$0xff]
      %v527 = vld [vmem:[%s1 + $0xc8] sm:$0xff]
      %v528 = vld [vmem:[%s1 + $0xd0] sm:$0xff]
      %v529 = vld [vmem:[%s1 + $0xd8] sm:$0xff]
      %v530 = vld [vmem:[%s1 + $0xe0] sm:$0xff]
      %v531 = vld [vmem:[%s1 + $0xe8] sm:$0xff]
      %v532 = vld [vmem:[%s1 + $0xf0] sm:$0xff]
      %v533 = vld [vmem:[%s1 + $0xf8] sm:$0xff]
      %v550 = vsel %vm389, %v423, %v411
      %v551 = vsel %vm391, %v435, %v550
      %v552 = vsel %vm393, %v447, %v551
      %v553 = vsel %vm395, %v459, %v552
      %v554 = vsel %vm397, %v471, %v553
      %v555 = vsel %vm399, %v483, %v554
      %v556 = vsel %vm401, %v495, %v555
      %v557 = vsel %vm389, %v429, %v417
      %v558 = vsel %vm391, %v441, %v557
      %v559 = vsel %vm393, %v453, %v558
      %v560 = vsel %vm395, %v465, %v559
      %v561 = vsel %vm397, %v477, %v560
      %v562 = vsel %vm399, %v489, %v561
      %v563 = vsel %vm401, %v501, %v562
      %566 = vmatprep.subr.mxu0 0.0
      %567 = vmatpush1.msra.mxu0 %v502
      %568 = vmatprep.subr.mxu0 0.0
      %569 = vmatpush1.msra.mxu0 %v503
      %570 = vmatprep.subr.mxu0 0.0
      %571 = vmatpush1.msra.mxu0 %v504
      %572 = vmatprep.subr.mxu0 0.0
      %573 = vmatpush1.msra.mxu0 %v505
      %574 = vmatprep.subr.mxu0 0.0
      %575 = vmatpush1.msra.mxu0 %v506
      %576 = vmatprep.subr.mxu0 0.0
      %577 = vmatpush1.msra.mxu0 %v507
      %578 = vmatprep.subr.mxu0 0.0
      %579 = vmatpush1.msra.mxu0 %v508
      %580 = vmatprep.subr.mxu0 0.0
      %581 = vmatpush1.msra.mxu0 %v509
      %582 = vmatprep.subr.mxu0 0.0
      %583 = vmatpush1.msra.mxu0 %v510
      %584 = vmatprep.subr.mxu0 0.0
      %585 = vmatpush1.msra.mxu0 %v511
      %586 = vmatprep.subr.mxu0 0.0
      %587 = vmatpush1.msra.mxu0 %v512
      %588 = vmatprep.subr.mxu0 0.0
      %589 = vmatpush1.msra.mxu0 %v513
      %590 = vmatprep.subr.mxu0 0.0
      %591 = vmatpush1.msra.mxu0 %v514
      %592 = vmatprep.subr.mxu0 0.0
      %593 = vmatpush1.msra.mxu0 %v515
      %594 = vmatprep.subr.mxu0 0.0
      %595 = vmatpush1.msra.mxu0 %v516
      %596 = vmatprep.subr.mxu0 0.0
      %597 = vmatpush1.msra.mxu0 %v517
      %598 = vmatprep.subr.mxu0 0.0
      %599 = vmatpush1.msra.mxu0 %v518
      %600 = vmatprep.subr.mxu0 0.0
      %601 = vmatpush1.msra.mxu0 %v519
      %602 = vmatprep.subr.mxu0 0.0
      %603 = vmatpush1.msra.mxu0 %v520
      %604 = vmatprep.subr.mxu0 0.0
      %605 = vmatpush1.msra.mxu0 %v521
      %606 = vmatprep.subr.mxu0 0.0
      %607 = vmatpush1.msra.mxu0 %v522
      %608 = vmatprep.subr.mxu0 0.0
      %609 = vmatpush1.msra.mxu0 %v523
      %610 = vmatprep.subr.mxu0 0.0
      %611 = vmatpush1.msra.mxu0 %v524
      %612 = vmatprep.subr.mxu0 0.0
      %613 = vmatpush1.msra.mxu0 %v525
      %614 = vmatprep.subr.mxu0 0.0
      %615 = vmatpush1.msra.mxu0 %v526
      %616 = vmatprep.subr.mxu0 0.0
      %617 = vmatpush1.msra.mxu0 %v527
      %618 = vmatprep.subr.mxu0 0.0
      %619 = vmatpush1.msra.mxu0 %v528
      %620 = vmatprep.subr.mxu0 0.0
      %621 = vmatpush1.msra.mxu0 %v529
      %622 = vmatprep.subr.mxu0 0.0
      %623 = vmatpush1.msra.mxu0 %v530
      %624 = vmatprep.subr.mxu0 0.0
      %625 = vmatpush1.msra.mxu0 %v531
      %626 = vmatprep.subr.mxu0 0.0
      %627 = vmatpush1.msra.mxu0 %v532
      %628 = vmatprep.subr.mxu0 0.0
      %629 = vmatpush1.msra.mxu0 %v533
      %630 = vmatprep.mubr.f32.mxu0 %v563
      %631 = vmatmul.mubr.f32.gmra.mrb[0].mxu0 %v556
      %v632 = vpop.f32.mrb[0].mxu0
      %v633 = vadd.f32 0.0, %v632
      %v634 = vpop.f32.mrb[0].mxu0
      %635 = vdwg.mxu0
      %v636 = vmul.f32 %v633, 0.0078125
      %vm637 = vcmask 130048
      %638 = vst.msk [vmem:[%s291] sm:$0xff] %vm637, %v636
      %v639 = vld [vmem:[%s2] sm:$0xff]
      %v640 = vld [vmem:[%s2 + $0x8] sm:$0xff]
      %v641 = vld [vmem:[%s2 + $0x10] sm:$0xff]
      %v642 = vld [vmem:[%s2 + $0x18] sm:$0xff]
      %v643 = vld [vmem:[%s2 + $0x20] sm:$0xff]
      %v644 = vld [vmem:[%s2 + $0x28] sm:$0xff]
      %v645 = vld [vmem:[%s2 + $0x30] sm:$0xff]
      %v646 = vld [vmem:[%s2 + $0x38] sm:$0xff]
      %v647 = vld [vmem:[%s2 + $0x40] sm:$0xff]
      %v648 = vld [vmem:[%s2 + $0x48] sm:$0xff]
      %v649 = vld [vmem:[%s2 + $0x50] sm:$0xff]
      %v650 = vld [vmem:[%s2 + $0x58] sm:$0xff]
      %v651 = vld [vmem:[%s2 + $0x60] sm:$0xff]
      %v652 = vld [vmem:[%s2 + $0x68] sm:$0xff]
      %v653 = vld [vmem:[%s2 + $0x70] sm:$0xff]
      %v654 = vld [vmem:[%s2 + $0x78] sm:$0xff]
      %v655 = vld [vmem:[%s2 + $0x80] sm:$0xff]
      %v656 = vld [vmem:[%s2 + $0x88] sm:$0xff]
      %v657 = vld [vmem:[%s2 + $0x90] sm:$0xff]
      %v658 = vld [vmem:[%s2 + $0x98] sm:$0xff]
      %v659 = vld [vmem:[%s2 + $0xa0] sm:$0xff]
      %v660 = vld [vmem:[%s2 + $0xa8] sm:$0xff]
      %v661 = vld [vmem:[%s2 + $0xb0] sm:$0xff]
      %v662 = vld [vmem:[%s2 + $0xb8] sm:$0xff]
      %v663 = vld [vmem:[%s2 + $0xc0] sm:$0xff]
      %v664 = vld [vmem:[%s2 + $0xc8] sm:$0xff]
      %v665 = vld [vmem:[%s2 + $0xd0] sm:$0xff]
      %v666 = vld [vmem:[%s2 + $0xd8] sm:$0xff]
      %v667 = vld [vmem:[%s2 + $0xe0] sm:$0xff]
      %v668 = vld [vmem:[%s2 + $0xe8] sm:$0xff]
      %v669 = vld [vmem:[%s2 + $0xf0] sm:$0xff]
      %v670 = vld [vmem:[%s2 + $0xf8] sm:$0xff]
      %671 = vmatprep.subr.mxu0 0.0
      %672 = vmatpush1.msra.mxu0 %v639
      %673 = vmatprep.subr.mxu0 0.0
      %674 = vmatpush1.msra.mxu0 %v640
      %675 = vmatprep.subr.mxu0 0.0
      %676 = vmatpush1.msra.mxu0 %v641
      %677 = vmatprep.subr.mxu0 0.0
      %678 = vmatpush1.msra.mxu0 %v642
      %679 = vmatprep.subr.mxu0 0.0
      %680 = vmatpush1.msra.mxu0 %v643
      %681 = vmatprep.subr.mxu0 0.0
      %682 = vmatpush1.msra.mxu0 %v644
      %683 = vmatprep.subr.mxu0 0.0
      %684 = vmatpush1.msra.mxu0 %v645
      %685 = vmatprep.subr.mxu0 0.0
      %686 = vmatpush1.msra.mxu0 %v646
      %687 = vmatprep.subr.mxu0 0.0
      %688 = vmatpush1.msra.mxu0 %v647
      %689 = vmatprep.subr.mxu0 0.0
      %690 = vmatpush1.msra.mxu0 %v648
      %691 = vmatprep.subr.mxu0 0.0
      %692 = vmatpush1.msra.mxu0 %v649
      %693 = vmatprep.subr.mxu0 0.0
      %694 = vmatpush1.msra.mxu0 %v650
      %695 = vmatprep.subr.mxu0 0.0
      %696 = vmatpush1.msra.mxu0 %v651
      %697 = vmatprep.subr.mxu0 0.0
      %698 = vmatpush1.msra.mxu0 %v652
      %699 = vmatprep.subr.mxu0 0.0
      %700 = vmatpush1.msra.mxu0 %v653
      %701 = vmatprep.subr.mxu0 0.0
      %702 = vmatpush1.msra.mxu0 %v654
      %703 = vmatprep.subr.mxu0 0.0
      %704 = vmatpush1.msra.mxu0 %v655
      %705 = vmatprep.subr.mxu0 0.0
      %706 = vmatpush1.msra.mxu0 %v656
      %707 = vmatprep.subr.mxu0 0.0
      %708 = vmatpush1.msra.mxu0 %v657
      %709 = vmatprep.subr.mxu0 0.0
      %710 = vmatpush1.msra.mxu0 %v658
      %711 = vmatprep.subr.mxu0 0.0
      %712 = vmatpush1.msra.mxu0 %v659
      %713 = vmatprep.subr.mxu0 0.0
      %714 = vmatpush1.msra.mxu0 %v660
      %715 = vmatprep.subr.mxu0 0.0
      %716 = vmatpush1.msra.mxu0 %v661
      %717 = vmatprep.subr.mxu0 0.0
      %718 = vmatpush1.msra.mxu0 %v662
      %719 = vmatprep.subr.mxu0 0.0
      %720 = vmatpush1.msra.mxu0 %v663
      %721 = vmatprep.subr.mxu0 0.0
      %722 = vmatpush1.msra.mxu0 %v664
      %723 = vmatprep.subr.mxu0 0.0
      %724 = vmatpush1.msra.mxu0 %v665
      %725 = vmatprep.subr.mxu0 0.0
      %726 = vmatpush1.msra.mxu0 %v666
      %727 = vmatprep.subr.mxu0 0.0
      %728 = vmatpush1.msra.mxu0 %v667
      %729 = vmatprep.subr.mxu0 0.0
      %730 = vmatpush1.msra.mxu0 %v668
      %731 = vmatprep.subr.mxu0 0.0
      %732 = vmatpush1.msra.mxu0 %v669
      %733 = vmatprep.subr.mxu0 0.0
      %734 = vmatpush1.msra.mxu0 %v670
      %735 = vmatprep.mubr.f32.mxu0 %v563
      %736 = vmatmul.mubr.f32.gmra.mrb[0].mxu0 %v556
      %v737 = vpop.f32.mrb[0].mxu0
      %v738 = vadd.f32 0.0, %v737
      %v739 = vpop.f32.mrb[0].mxu0
      %740 = vdwg.mxu0
      %v741 = vmul.f32 %v738, 0.0078125
      %742 = vst.msk [vmem:[%s298] sm:$0xff] %vm637, %v741
      %p743 = scmp.lt.s32.totalorder %s21, 1
      %s744 = scalar_select %p743, %s21, 1
      %p745 = scmp.lt.s32.totalorder %s22, 0
      %s746 = scalar_select %p745, %s22, 0
      %s747 = sadd.s32 %s746, %s744
      %s748 = smul.addr %s747, 8
      %s749 = scalar_lea.vmem %s3, %s748
      %p750 = scmp.lt.s32.totalorder %s21, 1
      %s751 = scalar_select %p750, %s21, 1
      %p752 = scmp.lt.s32.totalorder %s22, 0
      %s753 = scalar_select %p752, %s22, 0
      %s754 = sadd.s32 %s753, %s751
      %s755 = smul.addr %s754, 8
      %s756 = scalar_lea.vmem %s4, %s755
      %p757 = scmp.lt.s32.totalorder %s21, 1
      %s758 = scalar_select %p757, %s21, 1
      %p759 = scmp.lt.s32.totalorder %s22, 0
      %s760 = scalar_select %p759, %s22, 0
      %s761 = sadd.s32 %s760, %s758
      %s762 = smul.addr %s761, 8
      %s763 = scalar_lea.vmem %s5, %s762
      // Predicated region
      $region33: #{project_excite_pallas.2} parent=31 // pred_check
        %p764 = pneg %p119
      $region34: #{project_excite_pallas.2} parent=31 // pred_check_branch
        %766 = sbr.rel (%p764) target = $region36
      $region35: #{project_excite_pallas.2} parent=31 // pred_region
        _
      $region36: #{project_excite_pallas.2} parent=31 // pred_fallthru
        _
      // Predicated region
      $region37: #{project_excite_pallas.2} parent=31 // pred_check
        %p767 = pneg %p147
      $region38: #{project_excite_pallas.2} parent=31 // pred_check_branch
        %769 = sbr.rel (%p767) target = $region40
      $region39: #{project_excite_pallas.2} parent=31 // pred_region
        _
      $region40: #{project_excite_pallas.2} parent=31 // pred_fallthru
        _
      // Predicated region
      $region41: #{project_excite_pallas.2} parent=31 // pred_check
        %p770 = pneg %p175
      $region42: #{project_excite_pallas.2} parent=31 // pred_check_branch
        %772 = sbr.rel (%p770) target = $region44
      $region43: #{project_excite_pallas.2} parent=31 // pred_region
        _
      $region44: #{project_excite_pallas.2} parent=31 // pred_fallthru
        _
    $region32: #{project_excite_pallas.2} parent=5 // pred_fallthru
      _
    %p773 = scmp.le.s32.totalorder 2, %s12
    // Predicated region
    $region45: #{project_excite_pallas.2} parent=5 // pred_check
      %p774 = pneg %p773
    $region46: #{project_excite_pallas.2} parent=5 // pred_check_branch
      %776 = sbr.rel (%p774) target = $region48
    $region47: #{project_excite_pallas.2} parent=5 // pred_region
      %s777 = ssub.s32 %s12, 2
      // Predicated region
      $region49: #{project_excite_pallas.2} parent=47 // pred_check
        %p778 = pneg %p125
      $region50: #{project_excite_pallas.2} parent=47 // pred_check_branch
        %780 = sbr.rel (%p778) target = $region52
      $region51: #{project_excite_pallas.2} parent=47 // pred_region
        %p781 = scmp.lt.s32.totalorder %s23, 1
        %s782 = scalar_select %p781, %s23, 1
        %p783 = scmp.lt.s32.totalorder %s24, 0
        %s784 = scalar_select %p783, %s24, 0
        %s785 = sadd.s32 %s784, %s782
        %s786 = smul.addr %s785, 8
        %s787 = scalar_lea.vmem %s3, %s786
      $region52: #{project_excite_pallas.2} parent=47 // pred_fallthru
        _
      // Predicated region
      $region53: #{project_excite_pallas.2} parent=47 // pred_check
        %p788 = pneg %p153
      $region54: #{project_excite_pallas.2} parent=47 // pred_check_branch
        %790 = sbr.rel (%p788) target = $region56
      $region55: #{project_excite_pallas.2} parent=47 // pred_region
        %p791 = scmp.lt.s32.totalorder %s23, 1
        %s792 = scalar_select %p791, %s23, 1
        %p793 = scmp.lt.s32.totalorder %s24, 0
        %s794 = scalar_select %p793, %s24, 0
        %s795 = sadd.s32 %s794, %s792
        %s796 = smul.addr %s795, 8
        %s797 = scalar_lea.vmem %s4, %s796
      $region56: #{project_excite_pallas.2} parent=47 // pred_fallthru
        _
      // Predicated region
      $region57: #{project_excite_pallas.2} parent=47 // pred_check
        %p798 = pneg %p181
      $region58: #{project_excite_pallas.2} parent=47 // pred_check_branch
        %800 = sbr.rel (%p798) target = $region60
      $region59: #{project_excite_pallas.2} parent=47 // pred_region
        %p801 = scmp.lt.s32.totalorder %s23, 1
        %s802 = scalar_select %p801, %s23, 1
        %p803 = scmp.lt.s32.totalorder %s24, 0
        %s804 = scalar_select %p803, %s24, 0
        %s805 = sadd.s32 %s804, %s802
        %s806 = smul.addr %s805, 8
        %s807 = scalar_lea.vmem %s5, %s806
      $region60: #{project_excite_pallas.2} parent=47 // pred_fallthru
        _
    $region48: #{project_excite_pallas.2} parent=5 // pred_fallthru
      _
  $region6: #{project_excite_pallas.2} parent=0 // loop_footer
    %s16 = sadd.s32 1, %s12
  $region7: #{project_excite_pallas.2} parent=0 // loop_footer_branch
    %11 = sbr.rel target = $region3
  $region8: #{project_excite_pallas.2} parent=0 // loop_exit
    _

// kernel: project_excite_pallas.3
$region0: #{project_excite_pallas.3}
  #allocation0 [shape = 'u32[]', space=smem, size = 0x4, offset = 0x4, fixed_abs, tag = 'smem constant byte address 0x4 - core index']
  #allocation1 [shape = 'u32[144,128]{1,0:T(1,128)}', space=vmem, size = 0x12000, scoped, tag = 'internal scratch']
  #allocation2 [shape = 'f32[4,2048]{1,0:T(4,128)}', space=vmem, size = 0x8000, scoped, tag = 'scratch operand']
  %s0 = inlined_call_operand.vmem [shape: f32[2,8,2048], index: 0, kind: input, shape index: {}]
  %s1 = inlined_call_operand.vmem [shape: f32[2,1,4,8], index: 1, kind: input, shape index: {}]
  %s2 = inlined_call_operand.vmem [shape: f32[2,4,256], index: 2, kind: input, shape index: {}]
  %s3 = inlined_call_operand.vmem [shape: f32[8,4], index: 3, kind: input, shape index: {}]
  %s4 = inlined_call_operand.vmem [shape: f32[8,1], index: 4, kind: input, shape index: {}]
  %s5 = inlined_call_operand.vmem [shape: f32[2,8,2048], index: 5, kind: output, shape index: {}]
  %s6 = sld [smem:[#allocation0]]
  $region53: #{project_excite_pallas.3} parent=0
    _
  %s8 = ssub.s32 1, %s6
  %s9 = scalar_select 0, %s8, %s6
  loop: start=0, step=1, limit=4
  $region2: #{project_excite_pallas.3} parent=0 // loop_pre_header
    _
  $region3: #{project_excite_pallas.3} parent=0 // loop_header
    %s11 = sphi 0, %s15
    %p12 = scmp.ge.s32.totalorder %s11, 4
    %s18 = sphi 0, %s30
    %s19 = sphi 0, %s26
    %s20 = sphi 0, %s18
    %s21 = sphi 0, %s19
    %s22 = sphi 0, %s20
    %s23 = sphi 0, %s21
    %s35 = sphi 0, %s37
    %s38 = sphi 0, %s35
    %s39 = sphi 0, %s38
    %s55 = sphi 0, %s39
    %s63 = sphi 0, %s65
    %s66 = sphi 0, %s63
    %s67 = sphi 0, %s66
    %s83 = sphi 0, %s67
    %s89 = sphi 0, %s91
    %s92 = sphi 0, %s89
    %s93 = sphi 0, %s92
    %s109 = sphi 0, %s93
    %s113 = sphi 0, %s113
    %s115 = sphi 0, %s113
    %s116 = sphi 0, %s115
    %s130 = sphi 0, %s116
    %s134 = sphi 0, %s134
    %s136 = sphi 0, %s134
    %s137 = sphi 0, %s136
    %s151 = sphi 0, %s137
    %s159 = sphi 0, %s161
    %s162 = sphi 0, %s159
    %s163 = sphi 0, %s162
    %s179 = sphi 0, %s163
  $region4: #{project_excite_pallas.3} parent=0 // loop_header_branch
    %14 = sbr.rel (%p12) target = $region8
  $region5: #{project_excite_pallas.3} parent=0 // loop_body
    %s16 = ssub.s32 %s11, 1
    %s17 = ssub.s32 %s11, 2
    %s24 = sadd.s32 1, %s19
    %p25 = scmp.ge.s32.totalorder %s24, 1
    %s26 = scalar_select %p25, 0, %s24
    %s27 = sadd.s32 1, %s18
    %s28 = scalar_select %p25, %s27, %s18
    %p29 = scmp.ge.s32.totalorder %s28, 2
    %s30 = scalar_select %p29, 0, %s28
    %s31 = ssub.s32 %s18, %s30
    %s32 = ssub.s32 %s19, %s26
    %s33 = sor.u32 %s31, %s32
    %p34 = scmp.eq.s32.totalorder %s33, 0
    %s36 = sadd.s32 %s35, 1
    %s37 = scalar_select %p34, %s35, %s36
    %p40 = pneg %p34
    %p41 = scmp.eq.s32.totalorder %s11, 1
    %p42 = por %p40, %p41
    %p43 = scmp.ne.s32.totalorder %s35, %s38
    %p44 = scmp.eq.s32.totalorder %s11, 0
    %p45 = por %p43, %p44
    %p46 = scmp.ne.s32.totalorder %s35, %s38
    %p47 = scmp.eq.s32.totalorder %s16, 1
    %p48 = por %p46, %p47
    %p49 = scmp.ne.s32.totalorder %s38, %s39
    %p50 = scmp.eq.s32.totalorder %s16, 0
    %p51 = por %p49, %p50
    %p52 = scmp.ne.s32.totalorder %s38, %s39
    %p53 = scmp.eq.s32.totalorder %s17, 1
    %p54 = por %p52, %p53
    %p56 = scmp.ne.s32.totalorder %s39, %s55
    %p57 = scmp.eq.s32.totalorder %s17, 0
    %p58 = por %p56, %p57
    %s59 = ssub.s32 %s18, %s30
    %s60 = ssub.s32 %s19, %s26
    %s61 = sor.u32 %s59, %s60
    %p62 = scmp.eq.s32.totalorder %s61, 0
    %s64 = sadd.s32 %s63, 1
    %s65 = scalar_select %p62, %s63, %s64
    %p68 = pneg %p62
    %p69 = scmp.eq.s32.totalorder %s11, 1
    %p70 = por %p68, %p69
    %p71 = scmp.ne.s32.totalorder %s63, %s66
    %p72 = scmp.eq.s32.totalorder %s11, 0
    %p73 = por %p71, %p72
    %p74 = scmp.ne.s32.totalorder %s63, %s66
    %p75 = scmp.eq.s32.totalorder %s16, 1
    %p76 = por %p74, %p75
    %p77 = scmp.ne.s32.totalorder %s66, %s67
    %p78 = scmp.eq.s32.totalorder %s16, 0
    %p79 = por %p77, %p78
    %p80 = scmp.ne.s32.totalorder %s66, %s67
    %p81 = scmp.eq.s32.totalorder %s17, 1
    %p82 = por %p80, %p81
    %p84 = scmp.ne.s32.totalorder %s67, %s83
    %p85 = scmp.eq.s32.totalorder %s17, 0
    %p86 = por %p84, %p85
    %s87 = ssub.s32 %s18, %s30
    %p88 = scmp.eq.s32.totalorder %s87, 0
    %s90 = sadd.s32 %s89, 1
    %s91 = scalar_select %p88, %s89, %s90
    %p94 = pneg %p88
    %p95 = scmp.eq.s32.totalorder %s11, 1
    %p96 = por %p94, %p95
    %p97 = scmp.ne.s32.totalorder %s89, %s92
    %p98 = scmp.eq.s32.totalorder %s11, 0
    %p99 = por %p97, %p98
    %p100 = scmp.ne.s32.totalorder %s89, %s92
    %p101 = scmp.eq.s32.totalorder %s16, 1
    %p102 = por %p100, %p101
    %p103 = scmp.ne.s32.totalorder %s92, %s93
    %p104 = scmp.eq.s32.totalorder %s16, 0
    %p105 = por %p103, %p104
    %p106 = scmp.ne.s32.totalorder %s92, %s93
    %p107 = scmp.eq.s32.totalorder %s17, 1
    %p108 = por %p106, %p107
    %p110 = scmp.ne.s32.totalorder %s93, %s109
    %p111 = scmp.eq.s32.totalorder %s17, 0
    %p112 = por %p110, %p111
    %s114 = sadd.s32 %s113, 1
    %p117 = scmp.eq.s32.totalorder %s11, 1
    %p118 = scmp.ne.s32.totalorder %s113, %s115
    %p119 = scmp.eq.s32.totalorder %s11, 0
    %p120 = por %p118, %p119
    %p121 = scmp.ne.s32.totalorder %s113, %s115
    %p122 = scmp.eq.s32.totalorder %s16, 1
    %p123 = por %p121, %p122
    %p124 = scmp.ne.s32.totalorder %s115, %s116
    %p125 = scmp.eq.s32.totalorder %s16, 0
    %p126 = por %p124, %p125
    %p127 = scmp.ne.s32.totalorder %s115, %s116
    %p128 = scmp.eq.s32.totalorder %s17, 1
    %p129 = por %p127, %p128
    %p131 = scmp.ne.s32.totalorder %s116, %s130
    %p132 = scmp.eq.s32.totalorder %s17, 0
    %p133 = por %p131, %p132
    %s135 = sadd.s32 %s134, 1
    %p138 = scmp.eq.s32.totalorder %s11, 1
    %p139 = scmp.ne.s32.totalorder %s134, %s136
    %p140 = scmp.eq.s32.totalorder %s11, 0
    %p141 = por %p139, %p140
    %p142 = scmp.ne.s32.totalorder %s134, %s136
    %p143 = scmp.eq.s32.totalorder %s16, 1
    %p144 = por %p142, %p143
    %p145 = scmp.ne.s32.totalorder %s136, %s137
    %p146 = scmp.eq.s32.totalorder %s16, 0
    %p147 = por %p145, %p146
    %p148 = scmp.ne.s32.totalorder %s136, %s137
    %p149 = scmp.eq.s32.totalorder %s17, 1
    %p150 = por %p148, %p149
    %p152 = scmp.ne.s32.totalorder %s137, %s151
    %p153 = scmp.eq.s32.totalorder %s17, 0
    %p154 = por %p152, %p153
    %s155 = ssub.s32 %s18, %s30
    %s156 = ssub.s32 %s19, %s26
    %s157 = sor.u32 %s155, %s156
    %p158 = scmp.eq.s32.totalorder %s157, 0
    %s160 = sadd.s32 %s159, 1
    %s161 = scalar_select %p158, %s159, %s160
    %p164 = pneg %p158
    %p165 = scmp.eq.s32.totalorder %s11, 1
    %p166 = por %p164, %p165
    %p167 = scmp.ne.s32.totalorder %s159, %s162
    %p168 = scmp.eq.s32.totalorder %s11, 0
    %p169 = por %p167, %p168
    %p170 = scmp.ne.s32.totalorder %s159, %s162
    %p171 = scmp.eq.s32.totalorder %s16, 1
    %p172 = por %p170, %p171
    %p173 = scmp.ne.s32.totalorder %s162, %s163
    %p174 = scmp.eq.s32.totalorder %s16, 0
    %p175 = por %p173, %p174
    %p176 = scmp.ne.s32.totalorder %s162, %s163
    %p177 = scmp.eq.s32.totalorder %s17, 1
    %p178 = por %p176, %p177
    %p180 = scmp.ne.s32.totalorder %s163, %s179
    %p181 = scmp.eq.s32.totalorder %s17, 0
    %p182 = por %p180, %p181
    %p183 = scmp.le.s32.totalorder 1, %s11
    %p184 = scmp.lt.s32.totalorder %s11, 3
    %p185 = pnand %p183, %p184
    %p186 = pneg %p185
    // Predicated region
    $region9: #{project_excite_pallas.3} parent=5 // pred_check
      _
    $region10: #{project_excite_pallas.3} parent=5 // pred_check_branch
      %188 = sbr.rel (%p185) target = $region12
    $region11: #{project_excite_pallas.3} parent=5 // pred_region
      %s189 = ssub.s32 %s11, 1
      // Predicated region
      $region13: #{project_excite_pallas.3} parent=11 // pred_check
        %p190 = pneg %p126
      $region14: #{project_excite_pallas.3} parent=11 // pred_check_branch
        %192 = sbr.rel (%p190) target = $region16
      $region15: #{project_excite_pallas.3} parent=11 // pred_region
        _
      $region16: #{project_excite_pallas.3} parent=11 // pred_fallthru
        _
      // Predicated region
      $region17: #{project_excite_pallas.3} parent=11 // pred_check
        %p193 = pneg %p147
      $region18: #{project_excite_pallas.3} parent=11 // pred_check_branch
        %195 = sbr.rel (%p193) target = $region20
      $region19: #{project_excite_pallas.3} parent=11 // pred_region
        _
      $region20: #{project_excite_pallas.3} parent=11 // pred_fallthru
        _
    $region12: #{project_excite_pallas.3} parent=5 // pred_fallthru
      _
    %p196 = scmp.lt.s32.totalorder %s11, 2
    // Predicated region
    $region21: #{project_excite_pallas.3} parent=5 // pred_check
      %p197 = pneg %p196
    $region22: #{project_excite_pallas.3} parent=5 // pred_check_branch
      %199 = sbr.rel (%p197) target = $region24
    $region23: #{project_excite_pallas.3} parent=5 // pred_region
      // Predicated region
      $region25: #{project_excite_pallas.3} parent=23 // pred_check
        %p200 = pneg %p45
      $region26: #{project_excite_pallas.3} parent=23 // pred_check_branch
        %202 = sbr.rel (%p200) target = $region28
      $region27: #{project_excite_pallas.3} parent=23 // pred_region
        %s203 = smul.u32 16, %s19
        %p204 = scmp.lt.s32.totalorder %s18, 1
        %s205 = scalar_select %p204, %s18, 1
        %p206 = scmp.lt.s32.totalorder %s203, 15
        %s207 = scalar_select %p206, %s203, 15
        %s208 = smul.addr %s205, 16
        %s209 = sadd.s32 %s207, %s208
        %s210 = smul.addr %s209, 8
        %s211 = scalar_lea.vmem %s0, %s210
        %s212 = smul.u32 16, %s19
      $region28: #{project_excite_pallas.3} parent=23 // pred_fallthru
        _
      // Predicated region
      $region29: #{project_excite_pallas.3} parent=23 // pred_check
        %p213 = pneg %p73
      $region30: #{project_excite_pallas.3} parent=23 // pred_check_branch
        %215 = sbr.rel (%p213) target = $region32
      $region31: #{project_excite_pallas.3} parent=23 // pred_region
        %p216 = scmp.lt.s32.totalorder %s18, 1
        %s217 = scalar_select %p216, %s18, 1
        %p218 = scmp.lt.s32.totalorder %s19, 0
        %s219 = scalar_select %p218, %s19, 0
        %s220 = sadd.s32 %s219, %s217
        %s221 = smul.addr %s220, 4
        %s222 = scalar_lea.vmem %s1, %s221
      $region32: #{project_excite_pallas.3} parent=23 // pred_fallthru
        _
      // Predicated region
      $region33: #{project_excite_pallas.3} parent=23 // pred_check
        %p223 = pneg %p99
      $region34: #{project_excite_pallas.3} parent=23 // pred_check_branch
        %225 = sbr.rel (%p223) target = $region36
      $region35: #{project_excite_pallas.3} parent=23 // pred_region
        %p226 = scmp.lt.s32.totalorder %s18, 1
        %s227 = scalar_select %p226, %s18, 1
        %s228 = smul.addr %s227, 2
        %s229 = smul.addr %s228, 4
        %s230 = scalar_lea.vmem %s2, %s229
      $region36: #{project_excite_pallas.3} parent=23 // pred_fallthru
        _
    $region24: #{project_excite_pallas.3} parent=5 // pred_fallthru
      _
    %p231 = scmp.le.s32.totalorder 1, %s11
    %p232 = scmp.lt.s32.totalorder %s11, 3
    %p233 = pnand %p231, %p232
    %p234 = pneg %p233
    // Predicated region
    $region37: #{project_excite_pallas.3} parent=5 // pred_check
      _
    $region38: #{project_excite_pallas.3} parent=5 // pred_check_branch
      %236 = sbr.rel (%p233) target = $region40
    $region39: #{project_excite_pallas.3} parent=5 // pred_region
      %s237 = ssub.s32 %s11, 1
      %s238 = smul.u32 16, %s21
      %p239 = scmp.lt.s32.totalorder %s20, 1
      %s240 = scalar_select %p239, %s20, 1
      %p241 = scmp.lt.s32.totalorder %s238, 15
      %s242 = scalar_select %p241, %s238, 15
      %s243 = smul.addr %s240, 16
      %s244 = sadd.s32 %s242, %s243
      %s245 = smul.addr %s244, 8
      %s246 = scalar_lea.vmem %s0, %s245
      %p247 = pneg %p51
      %p248 = pneg %p48
      %p249 = scmp.lt.s32.totalorder %s20, 1
      %s250 = scalar_select %p249, %s20, 1
      %p251 = scmp.lt.s32.totalorder %s21, 0
      %s252 = scalar_select %p251, %s21, 0
      %s253 = sadd.s32 %s252, %s250
      %s254 = smul.addr %s253, 4
      %s255 = scalar_lea.vmem %s1, %s254
      %p256 = pneg %p79
      %p257 = pneg %p76
      %p258 = scmp.lt.s32.totalorder %s20, 1
      %s259 = scalar_select %p258, %s20, 1
      %s260 = smul.addr %s259, 2
      %s261 = smul.addr %s260, 4
      %s262 = scalar_lea.vmem %s2, %s261
      %p263 = pneg %p105
      %p264 = pneg %p102
      %p265 = pneg %p126
      %p266 = pneg %p123
      %p267 = pneg %p147
      %p268 = pneg %p144
      %p269 = pneg %p175
      %p270 = pneg %p172
      %s271 = smul.u32 16, %s21
      %p272 = scmp.lt.s32.totalorder %s20, 1
      %s273 = scalar_select %p272, %s20, 1
      %p274 = scmp.lt.s32.totalorder %s271, 15
      %s275 = scalar_select %p274, %s271, 15
      %s276 = smul.addr %s273, 16
      %s277 = sadd.s32 %s275, %s276
      %s278 = smul.addr %s277, 8
      %s279 = scalar_lea.vmem %s5, %s278
      %s280 = smul.u32 16, %s21
      %p281 = scmp.lt.s32.totalorder %s20, 1
      %s282 = scalar_select %p281, %s20, 1
      %p283 = scmp.lt.s32.totalorder %s280, 15
      %s284 = scalar_select %p283, %s280, 15
      %s285 = smul.addr %s282, 16
      %s286 = sadd.s32 %s284, %s285
      %s287 = smul.addr %s286, 8
      %s288 = scalar_lea.vmem %s0, %s287
      %s289 = smul.u32 16, %s21
      %p290 = scmp.lt.s32.totalorder %s20, 1
      %s291 = scalar_select %p290, %s20, 1
      %p292 = scmp.lt.s32.totalorder %s21, 0
      %s293 = scalar_select %p292, %s21, 0
      %s294 = sadd.s32 %s293, %s291
      %s295 = smul.addr %s294, 4
      %s296 = scalar_lea.vmem %s1, %s295
      %p297 = scmp.lt.s32.totalorder %s20, 1
      %s298 = scalar_select %p297, %s20, 1
      %s299 = smul.addr %s298, 2
      %s300 = smul.addr %s299, 4
      %s301 = scalar_lea.vmem %s2, %s300
      %s302 = smul.u32 16, %s21
      %p303 = scmp.lt.s32.totalorder %s20, 1
      %s304 = scalar_select %p303, %s20, 1
      %p305 = scmp.lt.s32.totalorder %s302, 15
      %s306 = scalar_select %p305, %s302, 15
      %s307 = smul.addr %s304, 16
      %s308 = sadd.s32 %s306, %s307
      %s309 = smul.addr %s308, 8
      %s310 = scalar_lea.vmem %s5, %s309
      %s311 = smul.u32 16, %s21
      %v312 = vld [vmem:[%s301] sm:$0xff]
      %v313 = vld [vmem:[%s296] sm:$0xf]
      %315 = vset.pattern.permute.xlu0 0
      %316 = vperm.xlu0 %315, %v313
      %v317 = vpop.permute.xlu0 %316
      %v320 = vcombine.high %v312, %v312
      %v322 = vadd.f32 %v317, %v312
      %v323 = vadd.f32 %v317, %v320
      %v324 = vmax.f32 %v322, 0.0
      %v325 = vmax.f32 %v323, 0.0
      %v328 = vcombine.low %v324, %v325
      %330 = vst [vmem:[#allocation2] sm:$0xff] %v328
      %331 = vset.pattern.permute.xlu0 1
      %332 = vperm.xlu0 %331, %v313
      %v333 = vpop.permute.xlu0 %332
      %v335 = vadd.f32 %v333, %v312
      %v336 = vadd.f32 %v333, %v320
      %v337 = vmax.f32 %v335, 0.0
      %v338 = vmax.f32 %v336, 0.0
      %v341 = vcombine.low %v337, %v338
      %343 = vst [vmem:[#allocation2 + $0x8] sm:$0xff] %v341
      %344 = vset.pattern.permute.xlu0 2
      %345 = vperm.xlu0 %344, %v313
      %v346 = vpop.permute.xlu0 %345
      %v348 = vadd.f32 %v346, %v312
      %v349 = vadd.f32 %v346, %v320
      %v350 = vmax.f32 %v348, 0.0
      %v351 = vmax.f32 %v349, 0.0
      %v354 = vcombine.low %v350, %v351
      %356 = vst [vmem:[#allocation2 + $0x10] sm:$0xff] %v354
      %357 = vset.pattern.permute.xlu0 3
      %358 = vperm.xlu0 %357, %v313
      %v359 = vpop.permute.xlu0 %358
      %v361 = vadd.f32 %v359, %v312
      %v362 = vadd.f32 %v359, %v320
      %v363 = vmax.f32 %v361, 0.0
      %v364 = vmax.f32 %v362, 0.0
      %v367 = vcombine.low %v363, %v364
      %369 = vst [vmem:[#allocation2 + $0x18] sm:$0xff] %v367
      %370 = vset.pattern.permute.xlu0 4
      %371 = vperm.xlu0 %370, %v313
      %v372 = vpop.permute.xlu0 %371
      %v374 = vadd.f32 %v372, %v312
      %v375 = vadd.f32 %v372, %v320
      %v376 = vmax.f32 %v374, 0.0
      %v377 = vmax.f32 %v375, 0.0
      %v380 = vcombine.low %v376, %v377
      %382 = vst [vmem:[#allocation2 + $0x20] sm:$0xff] %v380
      %383 = vset.pattern.permute.xlu0 5
      %384 = vperm.xlu0 %383, %v313
      %v385 = vpop.permute.xlu0 %384
      %v387 = vadd.f32 %v385, %v312
      %v388 = vadd.f32 %v385, %v320
      %v389 = vmax.f32 %v387, 0.0
      %v390 = vmax.f32 %v388, 0.0
      %v393 = vcombine.low %v389, %v390
      %395 = vst [vmem:[#allocation2 + $0x28] sm:$0xff] %v393
      %396 = vset.pattern.permute.xlu0 6
      %397 = vperm.xlu0 %396, %v313
      %v398 = vpop.permute.xlu0 %397
      %v400 = vadd.f32 %v398, %v312
      %v401 = vadd.f32 %v398, %v320
      %v402 = vmax.f32 %v400, 0.0
      %v403 = vmax.f32 %v401, 0.0
      %v406 = vcombine.low %v402, %v403
      %408 = vst [vmem:[#allocation2 + $0x30] sm:$0xff] %v406
      %409 = vset.pattern.permute.xlu0 7
      %410 = vperm.xlu0 %409, %v313
      %v411 = vpop.permute.xlu0 %410
      %v413 = vadd.f32 %v411, %v312
      %v414 = vadd.f32 %v411, %v320
      %v415 = vmax.f32 %v413, 0.0
      %v416 = vmax.f32 %v414, 0.0
      %v419 = vcombine.low %v415, %v416
      %421 = vst [vmem:[#allocation2 + $0x38] sm:$0xff] %v419
      %v422 = vld [vmem:[%s3] sm:$0xff]
      %v423 = vld [vmem:[#allocation2] sm:$0xff]
      %v424 = vld [vmem:[#allocation2 + $0x8] sm:$0xff]
      %v425 = vld [vmem:[#allocation2 + $0x10] sm:$0xff]
      %v426 = vld [vmem:[#allocation2 + $0x18] sm:$0xff]
      %v427 = vld [vmem:[#allocation2 + $0x20] sm:$0xff]
      %v428 = vld [vmem:[#allocation2 + $0x28] sm:$0xff]
      %v429 = vld [vmem:[#allocation2 + $0x30] sm:$0xff]
      %v430 = vld [vmem:[#allocation2 + $0x38] sm:$0xff]
      %v431 = vld [vmem:[%s4] sm:$0xff]
      %433 = vset.pattern.permute.xlu0 0
      %434 = vperm.xlu0 %433, %v431
      %v435 = vpop.permute.xlu0 %434
      %v445 = vcombine.high %v423, %v423
      %v446 = vcombine.high %v424, %v424
      %v447 = vcombine.high %v425, %v425
      %v448 = vcombine.high %v426, %v426
      %v449 = vcombine.high %v427, %v427
      %v450 = vcombine.high %v428, %v428
      %v451 = vcombine.high %v429, %v429
      %v452 = vcombine.high %v430, %v430
      %vm453 = vcmask 31744
      %v455 = vsel %vm453, %v422, 0
      %vm457 = vcmask 1043456
      %v458 = vsel %vm457, %v423, 0
      %v460 = vsel %vm457, %v445, 0
      %v462 = vsel %vm457, %v424, 0
      %v464 = vsel %vm457, %v446, 0
      %v466 = vsel %vm457, %v425, 0
      %v468 = vsel %vm457, %v447, 0
      %v470 = vsel %vm457, %v426, 0
      %v472 = vsel %vm457, %v448, 0
      %v474 = vsel %vm457, %v427, 0
      %v476 = vsel %vm457, %v449, 0
      %v478 = vsel %vm457, %v428, 0
      %v480 = vsel %vm457, %v450, 0
      %v482 = vsel %vm457, %v429, 0
      %v484 = vsel %vm457, %v451, 0
      %v486 = vsel %vm457, %v430, 0
      %v488 = vsel %vm457, %v452, 0
      %490 = vmatprep.subr.mxu0 %v460
      %491 = vmatpush1.msra.mxu0 %v458
      %492 = vmatprep.subr.mxu0 0.0
      %493 = vmatpush1.msra.mxu0 0.0
      %494 = vmatprep.subr.mxu0 0.0
      %495 = vmatpush1.msra.mxu0 0.0
      %496 = vmatprep.subr.mxu0 0.0
      %497 = vmatpush1.msra.mxu0 0.0
      %498 = vmatprep.subr.mxu0 0.0
      %499 = vmatpush1.msra.mxu0 0.0
      %500 = vmatprep.subr.mxu0 0.0
      %501 = vmatpush1.msra.mxu0 0.0
      %502 = vmatprep.subr.mxu0 0.0
      %503 = vmatpush1.msra.mxu0 0.0
      %504 = vmatprep.subr.mxu0 0.0
      %505 = vmatpush1.msra.mxu0 0.0
      %506 = vmatprep.subr.mxu0 0.0
      %507 = vmatpush1.msra.mxu0 0.0
      %508 = vmatprep.subr.mxu0 0.0
      %509 = vmatpush1.msra.mxu0 0.0
      %510 = vmatprep.subr.mxu0 0.0
      %511 = vmatpush1.msra.mxu0 0.0
      %512 = vmatprep.subr.mxu0 0.0
      %513 = vmatpush1.msra.mxu0 0.0
      %514 = vmatprep.subr.mxu0 0.0
      %515 = vmatpush1.msra.mxu0 0.0
      %516 = vmatprep.subr.mxu0 0.0
      %517 = vmatpush1.msra.mxu0 0.0
      %518 = vmatprep.subr.mxu0 0.0
      %519 = vmatpush1.msra.mxu0 0.0
      %520 = vmatprep.subr.mxu0 0.0
      %521 = vmatpush1.msra.mxu0 0.0
      %522 = vmatprep.subr.mxu0 0.0
      %523 = vmatpush1.msra.mxu0 0.0
      %524 = vmatprep.subr.mxu0 0.0
      %525 = vmatpush1.msra.mxu0 0.0
      %526 = vmatprep.subr.mxu0 0.0
      %527 = vmatpush1.msra.mxu0 0.0
      %528 = vmatprep.subr.mxu0 0.0
      %529 = vmatpush1.msra.mxu0 0.0
      %530 = vmatprep.subr.mxu0 0.0
      %531 = vmatpush1.msra.mxu0 0.0
      %532 = vmatprep.subr.mxu0 0.0
      %533 = vmatpush1.msra.mxu0 0.0
      %534 = vmatprep.subr.mxu0 0.0
      %535 = vmatpush1.msra.mxu0 0.0
      %536 = vmatprep.subr.mxu0 0.0
      %537 = vmatpush1.msra.mxu0 0.0
      %538 = vmatprep.subr.mxu0 0.0
      %539 = vmatpush1.msra.mxu0 0.0
      %540 = vmatprep.subr.mxu0 0.0
      %541 = vmatpush1.msra.mxu0 0.0
      %542 = vmatprep.subr.mxu0 0.0
      %543 = vmatpush1.msra.mxu0 0.0
      %544 = vmatprep.subr.mxu0 0.0
      %545 = vmatpush1.msra.mxu0 0.0
      %546 = vmatprep.subr.mxu0 0.0
      %547 = vmatpush1.msra.mxu0 0.0
      %548 = vmatprep.subr.mxu0 0.0
      %549 = vmatpush1.msra.mxu0 0.0
      %550 = vmatprep.subr.mxu0 0.0
      %551 = vmatpush1.msra.mxu0 0.0
      %552 = vmatprep.subr.mxu0 0.0
      %553 = vmatpush1.msra.mxu0 0.0
      %554 = vmatprep.mubr.f32.mxu0 0.0
      %555 = vmatmul.mubr.f32.gmra.mrb[0].mxu0 %v455
      %v556 = vpop.f32.mrb[0].mxu0
      %v557 = vadd.f32 %v435, %v556
      %v558 = vpop.f32.mrb[0].mxu0
      %v559 = vadd.f32 %v435, %v558
      %560 = vdwg.mxu0
      %561 = vmatprep.subr.mxu0 %v464
      %562 = vmatpush1.msra.mxu0 %v462
      %563 = vmatprep.subr.mxu0 0.0
      %564 = vmatpush1.msra.mxu0 0.0
      %565 = vmatprep.subr.mxu0 0.0
      %566 = vmatpush1.msra.mxu0 0.0
      %567 = vmatprep.subr.mxu0 0.0
      %568 = vmatpush1.msra.mxu0 0.0
      %569 = vmatprep.subr.mxu0 0.0
      %570 = vmatpush1.msra.mxu0 0.0
      %571 = vmatprep.subr.mxu0 0.0
      %572 = vmatpush1.msra.mxu0 0.0
      %573 = vmatprep.subr.mxu0 0.0
      %574 = vmatpush1.msra.mxu0 0.0
      %575 = vmatprep.subr.mxu0 0.0
      %576 = vmatpush1.msra.mxu0 0.0
      %577 = vmatprep.subr.mxu0 0.0
      %578 = vmatpush1.msra.mxu0 0.0
      %579 = vmatprep.subr.mxu0 0.0
      %580 = vmatpush1.msra.mxu0 0.0
      %581 = vmatprep.subr.mxu0 0.0
      %582 = vmatpush1.msra.mxu0 0.0
      %583 = vmatprep.subr.mxu0 0.0
      %584 = vmatpush1.msra.mxu0 0.0
      %585 = vmatprep.subr.mxu0 0.0
      %586 = vmatpush1.msra.mxu0 0.0
      %587 = vmatprep.subr.mxu0 0.0
      %588 = vmatpush1.msra.mxu0 0.0
      %589 = vmatprep.subr.mxu0 0.0
      %590 = vmatpush1.msra.mxu0 0.0
      %591 = vmatprep.subr.mxu0 0.0
      %592 = vmatpush1.msra.mxu0 0.0
      %593 = vmatprep.subr.mxu0 0.0
      %594 = vmatpush1.msra.mxu0 0.0
      %595 = vmatprep.subr.mxu0 0.0
      %596 = vmatpush1.msra.mxu0 0.0
      %597 = vmatprep.subr.mxu0 0.0
      %598 = vmatpush1.msra.mxu0 0.0
      %599 = vmatprep.subr.mxu0 0.0
      %600 = vmatpush1.msra.mxu0 0.0
      %601 = vmatprep.subr.mxu0 0.0
      %602 = vmatpush1.msra.mxu0 0.0
      %603 = vmatprep.subr.mxu0 0.0
      %604 = vmatpush1.msra.mxu0 0.0
      %605 = vmatprep.subr.mxu0 0.0
      %606 = vmatpush1.msra.mxu0 0.0
      %607 = vmatprep.subr.mxu0 0.0
      %608 = vmatpush1.msra.mxu0 0.0
      %609 = vmatprep.subr.mxu0 0.0
      %610 = vmatpush1.msra.mxu0 0.0
      %611 = vmatprep.subr.mxu0 0.0
      %612 = vmatpush1.msra.mxu0 0.0
      %613 = vmatprep.subr.mxu0 0.0
      %614 = vmatpush1.msra.mxu0 0.0
      %615 = vmatprep.subr.mxu0 0.0
      %616 = vmatpush1.msra.mxu0 0.0
      %617 = vmatprep.subr.mxu0 0.0
      %618 = vmatpush1.msra.mxu0 0.0
      %619 = vmatprep.subr.mxu0 0.0
      %620 = vmatpush1.msra.mxu0 0.0
      %621 = vmatprep.subr.mxu0 0.0
      %622 = vmatpush1.msra.mxu0 0.0
      %623 = vmatprep.subr.mxu0 0.0
      %624 = vmatpush1.msra.mxu0 0.0
      %625 = vmatprep.mubr.f32.mxu0 0.0
      %626 = vmatmul.mubr.f32.gmra.mrb[0].mxu0 %v455
      %v627 = vpop.f32.mrb[0].mxu0
      %v628 = vadd.f32 %v435, %v627
      %v629 = vpop.f32.mrb[0].mxu0
      %v630 = vadd.f32 %v435, %v629
      %631 = vdwg.mxu0
      %632 = vmatprep.subr.mxu0 %v468
      %633 = vmatpush1.msra.mxu0 %v466
      %634 = vmatprep.subr.mxu0 0.0
      %635 = vmatpush1.msra.mxu0 0.0
      %636 = vmatprep.subr.mxu0 0.0
      %637 = vmatpush1.msra.mxu0 0.0
      %638 = vmatprep.subr.mxu0 0.0
      %639 = vmatpush1.msra.mxu0 0.0
      %640 = vmatprep.subr.mxu0 0.0
      %641 = vmatpush1.msra.mxu0 0.0
      %642 = vmatprep.subr.mxu0 0.0
      %643 = vmatpush1.msra.mxu0 0.0
      %644 = vmatprep.subr.mxu0 0.0
      %645 = vmatpush1.msra.mxu0 0.0
      %646 = vmatprep.subr.mxu0 0.0
      %647 = vmatpush1.msra.mxu0 0.0
      %648 = vmatprep.subr.mxu0 0.0
      %649 = vmatpush1.msra.mxu0 0.0
      %650 = vmatprep.subr.mxu0 0.0
      %651 = vmatpush1.msra.mxu0 0.0
      %652 = vmatprep.subr.mxu0 0.0
      %653 = vmatpush1.msra.mxu0 0.0
      %654 = vmatprep.subr.mxu0 0.0
      %655 = vmatpush1.msra.mxu0 0.0
      %656 = vmatprep.subr.mxu0 0.0
      %657 = vmatpush1.msra.mxu0 0.0
      %658 = vmatprep.subr.mxu0 0.0
      %659 = vmatpush1.msra.mxu0 0.0
      %660 = vmatprep.subr.mxu0 0.0
      %661 = vmatpush1.msra.mxu0 0.0
      %662 = vmatprep.subr.mxu0 0.0
      %663 = vmatpush1.msra.mxu0 0.0
      %664 = vmatprep.subr.mxu0 0.0
      %665 = vmatpush1.msra.mxu0 0.0
      %666 = vmatprep.subr.mxu0 0.0
      %667 = vmatpush1.msra.mxu0 0.0
      %668 = vmatprep.subr.mxu0 0.0
      %669 = vmatpush1.msra.mxu0 0.0
      %670 = vmatprep.subr.mxu0 0.0
      %671 = vmatpush1.msra.mxu0 0.0
      %672 = vmatprep.subr.mxu0 0.0
      %673 = vmatpush1.msra.mxu0 0.0
      %674 = vmatprep.subr.mxu0 0.0
      %675 = vmatpush1.msra.mxu0 0.0
      %676 = vmatprep.subr.mxu0 0.0
      %677 = vmatpush1.msra.mxu0 0.0
      %678 = vmatprep.subr.mxu0 0.0
      %679 = vmatpush1.msra.mxu0 0.0
      %680 = vmatprep.subr.mxu0 0.0
      %681 = vmatpush1.msra.mxu0 0.0
      %682 = vmatprep.subr.mxu0 0.0
      %683 = vmatpush1.msra.mxu0 0.0
      %684 = vmatprep.subr.mxu0 0.0
      %685 = vmatpush1.msra.mxu0 0.0
      %686 = vmatprep.subr.mxu0 0.0
      %687 = vmatpush1.msra.mxu0 0.0
      %688 = vmatprep.subr.mxu0 0.0
      %689 = vmatpush1.msra.mxu0 0.0
      %690 = vmatprep.subr.mxu0 0.0
      %691 = vmatpush1.msra.mxu0 0.0
      %692 = vmatprep.subr.mxu0 0.0
      %693 = vmatpush1.msra.mxu0 0.0
      %694 = vmatprep.subr.mxu0 0.0
      %695 = vmatpush1.msra.mxu0 0.0
      %696 = vmatprep.mubr.f32.mxu0 0.0
      %697 = vmatmul.mubr.f32.gmra.mrb[0].mxu0 %v455
      %v698 = vpop.f32.mrb[0].mxu0
      %v699 = vadd.f32 %v435, %v698
      %v700 = vpop.f32.mrb[0].mxu0
      %v701 = vadd.f32 %v435, %v700
      %702 = vdwg.mxu0
      %703 = vmatprep.subr.mxu0 %v472
      %704 = vmatpush1.msra.mxu0 %v470
      %705 = vmatprep.subr.mxu0 0.0
      %706 = vmatpush1.msra.mxu0 0.0
      %707 = vmatprep.subr.mxu0 0.0
      %708 = vmatpush1.msra.mxu0 0.0
      %709 = vmatprep.subr.mxu0 0.0
      %710 = vmatpush1.msra.mxu0 0.0
      %711 = vmatprep.subr.mxu0 0.0
      %712 = vmatpush1.msra.mxu0 0.0
      %713 = vmatprep.subr.mxu0 0.0
      %714 = vmatpush1.msra.mxu0 0.0
      %715 = vmatprep.subr.mxu0 0.0
      %716 = vmatpush1.msra.mxu0 0.0
      %717 = vmatprep.subr.mxu0 0.0
      %718 = vmatpush1.msra.mxu0 0.0
      %719 = vmatprep.subr.mxu0 0.0
      %720 = vmatpush1.msra.mxu0 0.0
      %721 = vmatprep.subr.mxu0 0.0
      %722 = vmatpush1.msra.mxu0 0.0
      %723 = vmatprep.subr.mxu0 0.0
      %724 = vmatpush1.msra.mxu0 0.0
      %725 = vmatprep.subr.mxu0 0.0
      %726 = vmatpush1.msra.mxu0 0.0
      %727 = vmatprep.subr.mxu0 0.0
      %728 = vmatpush1.msra.mxu0 0.0
      %729 = vmatprep.subr.mxu0 0.0
      %730 = vmatpush1.msra.mxu0 0.0
      %731 = vmatprep.subr.mxu0 0.0
      %732 = vmatpush1.msra.mxu0 0.0
      %733 = vmatprep.subr.mxu0 0.0
      %734 = vmatpush1.msra.mxu0 0.0
      %735 = vmatprep.subr.mxu0 0.0
      %736 = vmatpush1.msra.mxu0 0.0
      %737 = vmatprep.subr.mxu0 0.0
      %738 = vmatpush1.msra.mxu0 0.0
      %739 = vmatprep.subr.mxu0 0.0
      %740 = vmatpush1.msra.mxu0 0.0
      %741 = vmatprep.subr.mxu0 0.0
      %742 = vmatpush1.msra.mxu0 0.0
      %743 = vmatprep.subr.mxu0 0.0
      %744 = vmatpush1.msra.mxu0 0.0
      %745 = vmatprep.subr.mxu0 0.0
      %746 = vmatpush1.msra.mxu0 0.0
      %747 = vmatprep.subr.mxu0 0.0
      %748 = vmatpush1.msra.mxu0 0.0
      %749 = vmatprep.subr.mxu0 0.0
      %750 = vmatpush1.msra.mxu0 0.0
      %751 = vmatprep.subr.mxu0 0.0
      %752 = vmatpush1.msra.mxu0 0.0
      %753 = vmatprep.subr.mxu0 0.0
      %754 = vmatpush1.msra.mxu0 0.0
      %755 = vmatprep.subr.mxu0 0.0
      %756 = vmatpush1.msra.mxu0 0.0
      %757 = vmatprep.subr.mxu0 0.0
      %758 = vmatpush1.msra.mxu0 0.0
      %759 = vmatprep.subr.mxu0 0.0
      %760 = vmatpush1.msra.mxu0 0.0
      %761 = vmatprep.subr.mxu0 0.0
      %762 = vmatpush1.msra.mxu0 0.0
      %763 = vmatprep.subr.mxu0 0.0
      %764 = vmatpush1.msra.mxu0 0.0
      %765 = vmatprep.subr.mxu0 0.0
      %766 = vmatpush1.msra.mxu0 0.0
      %767 = vmatprep.mubr.f32.mxu0 0.0
      %768 = vmatmul.mubr.f32.gmra.mrb[0].mxu0 %v455
      %v769 = vpop.f32.mrb[0].mxu0
      %v770 = vadd.f32 %v435, %v769
      %v771 = vpop.f32.mrb[0].mxu0
      %v772 = vadd.f32 %v435, %v771
      %773 = vdwg.mxu0
      %774 = vmatprep.subr.mxu0 %v476
      %775 = vmatpush1.msra.mxu0 %v474
      %776 = vmatprep.subr.mxu0 0.0
      %777 = vmatpush1.msra.mxu0 0.0
      %778 = vmatprep.subr.mxu0 0.0
      %779 = vmatpush1.msra.mxu0 0.0
      %780 = vmatprep.subr.mxu0 0.0
      %781 = vmatpush1.msra.mxu0 0.0
      %782 = vmatprep.subr.mxu0 0.0
      %783 = vmatpush1.msra.mxu0 0.0
      %784 = vmatprep.subr.mxu0 0.0
      %785 = vmatpush1.msra.mxu0 0.0
      %786 = vmatprep.subr.mxu0 0.0
      %787 = vmatpush1.msra.mxu0 0.0
      %788 = vmatprep.subr.mxu0 0.0
      %789 = vmatpush1.msra.mxu0 0.0
      %790 = vmatprep.subr.mxu0 0.0
      %791 = vmatpush1.msra.mxu0 0.0
      %792 = vmatprep.subr.mxu0 0.0
      %793 = vmatpush1.msra.mxu0 0.0
      %794 = vmatprep.subr.mxu0 0.0
      %795 = vmatpush1.msra.mxu0 0.0
      %796 = vmatprep.subr.mxu0 0.0
      %797 = vmatpush1.msra.mxu0 0.0
      %798 = vmatprep.subr.mxu0 0.0
      %799 = vmatpush1.msra.mxu0 0.0
      %800 = vmatprep.subr.mxu0 0.0
      %801 = vmatpush1.msra.mxu0 0.0
      %802 = vmatprep.subr.mxu0 0.0
      %803 = vmatpush1.msra.mxu0 0.0
      %804 = vmatprep.subr.mxu0 0.0
      %805 = vmatpush1.msra.mxu0 0.0
      %806 = vmatprep.subr.mxu0 0.0
      %807 = vmatpush1.msra.mxu0 0.0
      %808 = vmatprep.subr.mxu0 0.0
      %809 = vmatpush1.msra.mxu0 0.0
      %810 = vmatprep.subr.mxu0 0.0
      %811 = vmatpush1.msra.mxu0 0.0
      %812 = vmatprep.subr.mxu0 0.0
      %813 = vmatpush1.msra.mxu0 0.0
      %814 = vmatprep.subr.mxu0 0.0
      %815 = vmatpush1.msra.mxu0 0.0
      %816 = vmatprep.subr.mxu0 0.0
      %817 = vmatpush1.msra.mxu0 0.0
      %818 = vmatprep.subr.mxu0 0.0
      %819 = vmatpush1.msra.mxu0 0.0
      %820 = vmatprep.subr.mxu0 0.0
      %821 = vmatpush1.msra.mxu0 0.0
      %822 = vmatprep.subr.mxu0 0.0
      %823 = vmatpush1.msra.mxu0 0.0
      %824 = vmatprep.subr.mxu0 0.0
      %825 = vmatpush1.msra.mxu0 0.0
      %826 = vmatprep.subr.mxu0 0.0
      %827 = vmatpush1.msra.mxu0 0.0
      %828 = vmatprep.subr.mxu0 0.0
      %829 = vmatpush1.msra.mxu0 0.0
      %830 = vmatprep.subr.mxu0 0.0
      %831 = vmatpush1.msra.mxu0 0.0
      %832 = vmatprep.subr.mxu0 0.0
      %833 = vmatpush1.msra.mxu0 0.0
      %834 = vmatprep.subr.mxu0 0.0
      %835 = vmatpush1.msra.mxu0 0.0
      %836 = vmatprep.subr.mxu0 0.0
      %837 = vmatpush1.msra.mxu0 0.0
      %838 = vmatprep.mubr.f32.mxu0 0.0
      %839 = vmatmul.mubr.f32.gmra.mrb[0].mxu0 %v455
      %v840 = vpop.f32.mrb[0].mxu0
      %v841 = vadd.f32 %v435, %v840
      %v842 = vpop.f32.mrb[0].mxu0
      %v843 = vadd.f32 %v435, %v842
      %844 = vdwg.mxu0
      %845 = vmatprep.subr.mxu0 %v480
      %846 = vmatpush1.msra.mxu0 %v478
      %847 = vmatprep.subr.mxu0 0.0
      %848 = vmatpush1.msra.mxu0 0.0
      %849 = vmatprep.subr.mxu0 0.0
      %850 = vmatpush1.msra.mxu0 0.0
      %851 = vmatprep.subr.mxu0 0.0
      %852 = vmatpush1.msra.mxu0 0.0
      %853 = vmatprep.subr.mxu0 0.0
      %854 = vmatpush1.msra.mxu0 0.0
      %855 = vmatprep.subr.mxu0 0.0
      %856 = vmatpush1.msra.mxu0 0.0
      %857 = vmatprep.subr.mxu0 0.0
      %858 = vmatpush1.msra.mxu0 0.0
      %859 = vmatprep.subr.mxu0 0.0
      %860 = vmatpush1.msra.mxu0 0.0
      %861 = vmatprep.subr.mxu0 0.0
      %862 = vmatpush1.msra.mxu0 0.0
      %863 = vmatprep.subr.mxu0 0.0
      %864 = vmatpush1.msra.mxu0 0.0
      %865 = vmatprep.subr.mxu0 0.0
      %866 = vmatpush1.msra.mxu0 0.0
      %867 = vmatprep.subr.mxu0 0.0
      %868 = vmatpush1.msra.mxu0 0.0
      %869 = vmatprep.subr.mxu0 0.0
      %870 = vmatpush1.msra.mxu0 0.0
      %871 = vmatprep.subr.mxu0 0.0
      %872 = vmatpush1.msra.mxu0 0.0
      %873 = vmatprep.subr.mxu0 0.0
      %874 = vmatpush1.msra.mxu0 0.0
      %875 = vmatprep.subr.mxu0 0.0
      %876 = vmatpush1.msra.mxu0 0.0
      %877 = vmatprep.subr.mxu0 0.0
      %878 = vmatpush1.msra.mxu0 0.0
      %879 = vmatprep.subr.mxu0 0.0
      %880 = vmatpush1.msra.mxu0 0.0
      %881 = vmatprep.subr.mxu0 0.0
      %882 = vmatpush1.msra.mxu0 0.0
      %883 = vmatprep.subr.mxu0 0.0
      %884 = vmatpush1.msra.mxu0 0.0
      %885 = vmatprep.subr.mxu0 0.0
      %886 = vmatpush1.msra.mxu0 0.0
      %887 = vmatprep.subr.mxu0 0.0
      %888 = vmatpush1.msra.mxu0 0.0
      %889 = vmatprep.subr.mxu0 0.0
      %890 = vmatpush1.msra.mxu0 0.0
      %891 = vmatprep.subr.mxu0 0.0
      %892 = vmatpush1.msra.mxu0 0.0
      %893 = vmatprep.subr.mxu0 0.0
      %894 = vmatpush1.msra.mxu0 0.0
      %895 = vmatprep.subr.mxu0 0.0
      %896 = vmatpush1.msra.mxu0 0.0
      %897 = vmatprep.subr.mxu0 0.0
      %898 = vmatpush1.msra.mxu0 0.0
      %899 = vmatprep.subr.mxu0 0.0
      %900 = vmatpush1.msra.mxu0 0.0
      %901 = vmatprep.subr.mxu0 0.0
      %902 = vmatpush1.msra.mxu0 0.0
      %903 = vmatprep.subr.mxu0 0.0
      %904 = vmatpush1.msra.mxu0 0.0
      %905 = vmatprep.subr.mxu0 0.0
      %906 = vmatpush1.msra.mxu0 0.0
      %907 = vmatprep.subr.mxu0 0.0
      %908 = vmatpush1.msra.mxu0 0.0
      %909 = vmatprep.mubr.f32.mxu0 0.0
      %910 = vmatmul.mubr.f32.gmra.mrb[0].mxu0 %v455
      %v911 = vpop.f32.mrb[0].mxu0
      %v912 = vadd.f32 %v435, %v911
      %v913 = vpop.f32.mrb[0].mxu0
      %v914 = vadd.f32 %v435, %v913
      %915 = vdwg.mxu0
      %916 = vmatprep.subr.mxu0 %v484
      %917 = vmatpush1.msra.mxu0 %v482
      %918 = vmatprep.subr.mxu0 0.0
      %919 = vmatpush1.msra.mxu0 0.0
      %920 = vmatprep.subr.mxu0 0.0
      %921 = vmatpush1.msra.mxu0 0.0
      %922 = vmatprep.subr.mxu0 0.0
      %923 = vmatpush1.msra.mxu0 0.0
      %924 = vmatprep.subr.mxu0 0.0
      %925 = vmatpush1.msra.mxu0 0.0
      %926 = vmatprep.subr.mxu0 0.0
      %927 = vmatpush1.msra.mxu0 0.0
      %928 = vmatprep.subr.mxu0 0.0
      %929 = vmatpush1.msra.mxu0 0.0
      %930 = vmatprep.subr.mxu0 0.0
      %931 = vmatpush1.msra.mxu0 0.0
      %932 = vmatprep.subr.mxu0 0.0
      %933 = vmatpush1.msra.mxu0 0.0
      %934 = vmatprep.subr.mxu0 0.0
      %935 = vmatpush1.msra.mxu0 0.0
      %936 = vmatprep.subr.mxu0 0.0
      %937 = vmatpush1.msra.mxu0 0.0
      %938 = vmatprep.subr.mxu0 0.0
      %939 = vmatpush1.msra.mxu0 0.0
      %940 = vmatprep.subr.mxu0 0.0
      %941 = vmatpush1.msra.mxu0 0.0
      %942 = vmatprep.subr.mxu0 0.0
      %943 = vmatpush1.msra.mxu0 0.0
      %944 = vmatprep.subr.mxu0 0.0
      %945 = vmatpush1.msra.mxu0 0.0
      %946 = vmatprep.subr.mxu0 0.0
      %947 = vmatpush1.msra.mxu0 0.0
      %948 = vmatprep.subr.mxu0 0.0
      %949 = vmatpush1.msra.mxu0 0.0
      %950 = vmatprep.subr.mxu0 0.0
      %951 = vmatpush1.msra.mxu0 0.0
      %952 = vmatprep.subr.mxu0 0.0
      %953 = vmatpush1.msra.mxu0 0.0
      %954 = vmatprep.subr.mxu0 0.0
      %955 = vmatpush1.msra.mxu0 0.0
      %956 = vmatprep.subr.mxu0 0.0
      %957 = vmatpush1.msra.mxu0 0.0
      %958 = vmatprep.subr.mxu0 0.0
      %959 = vmatpush1.msra.mxu0 0.0
      %960 = vmatprep.subr.mxu0 0.0
      %961 = vmatpush1.msra.mxu0 0.0
      %962 = vmatprep.subr.mxu0 0.0
      %963 = vmatpush1.msra.mxu0 0.0
      %964 = vmatprep.subr.mxu0 0.0
      %965 = vmatpush1.msra.mxu0 0.0
      %966 = vmatprep.subr.mxu0 0.0
      %967 = vmatpush1.msra.mxu0 0.0
      %968 = vmatprep.subr.mxu0 0.0
      %969 = vmatpush1.msra.mxu0 0.0
      %970 = vmatprep.subr.mxu0 0.0
      %971 = vmatpush1.msra.mxu0 0.0
      %972 = vmatprep.subr.mxu0 0.0
      %973 = vmatpush1.msra.mxu0 0.0
      %974 = vmatprep.subr.mxu0 0.0
      %975 = vmatpush1.msra.mxu0 0.0
      %976 = vmatprep.subr.mxu0 0.0
      %977 = vmatpush1.msra.mxu0 0.0
      %978 = vmatprep.subr.mxu0 0.0
      %979 = vmatpush1.msra.mxu0 0.0
      %980 = vmatprep.mubr.f32.mxu0 0.0
      %981 = vmatmul.mubr.f32.gmra.mrb[0].mxu0 %v455
      %v982 = vpop.f32.mrb[0].mxu0
      %v983 = vadd.f32 %v435, %v982
      %v984 = vpop.f32.mrb[0].mxu0
      %v985 = vadd.f32 %v435, %v984
      %986 = vdwg.mxu0
      %987 = vmatprep.subr.mxu0 %v488
      %988 = vmatpush1.msra.mxu0 %v486
      %989 = vmatprep.subr.mxu0 0.0
      %990 = vmatpush1.msra.mxu0 0.0
      %991 = vmatprep.subr.mxu0 0.0
      %992 = vmatpush1.msra.mxu0 0.0
      %993 = vmatprep.subr.mxu0 0.0
      %994 = vmatpush1.msra.mxu0 0.0
      %995 = vmatprep.subr.mxu0 0.0
      %996 = vmatpush1.msra.mxu0 0.0
      %997 = vmatprep.subr.mxu0 0.0
      %998 = vmatpush1.msra.mxu0 0.0
      %999 = vmatprep.subr.mxu0 0.0
      %1000 = vmatpush1.msra.mxu0 0.0
      %1001 = vmatprep.subr.mxu0 0.0
      %1002 = vmatpush1.msra.mxu0 0.0
      %1003 = vmatprep.subr.mxu0 0.0
      %1004 = vmatpush1.msra.mxu0 0.0
      %1005 = vmatprep.subr.mxu0 0.0
      %1006 = vmatpush1.msra.mxu0 0.0
      %1007 = vmatprep.subr.mxu0 0.0
      %1008 = vmatpush1.msra.mxu0 0.0
      %1009 = vmatprep.subr.mxu0 0.0
      %1010 = vmatpush1.msra.mxu0 0.0
      %1011 = vmatprep.subr.mxu0 0.0
      %1012 = vmatpush1.msra.mxu0 0.0
      %1013 = vmatprep.subr.mxu0 0.0
      %1014 = vmatpush1.msra.mxu0 0.0
      %1015 = vmatprep.subr.mxu0 0.0
      %1016 = vmatpush1.msra.mxu0 0.0
      %1017 = vmatprep.subr.mxu0 0.0
      %1018 = vmatpush1.msra.mxu0 0.0
      %1019 = vmatprep.subr.mxu0 0.0
      %1020 = vmatpush1.msra.mxu0 0.0
      %1021 = vmatprep.subr.mxu0 0.0
      %1022 = vmatpush1.msra.mxu0 0.0
      %1023 = vmatprep.subr.mxu0 0.0
      %1024 = vmatpush1.msra.mxu0 0.0
      %1025 = vmatprep.subr.mxu0 0.0
      %1026 = vmatpush1.msra.mxu0 0.0
      %1027 = vmatprep.subr.mxu0 0.0
      %1028 = vmatpush1.msra.mxu0 0.0
      %1029 = vmatprep.subr.mxu0 0.0
      %1030 = vmatpush1.msra.mxu0 0.0
      %1031 = vmatprep.subr.mxu0 0.0
      %1032 = vmatpush1.msra.mxu0 0.0
      %1033 = vmatprep.subr.mxu0 0.0
      %1034 = vmatpush1.msra.mxu0 0.0
      %1035 = vmatprep.subr.mxu0 0.0
      %1036 = vmatpush1.msra.mxu0 0.0
      %1037 = vmatprep.subr.mxu0 0.0
      %1038 = vmatpush1.msra.mxu0 0.0
      %1039 = vmatprep.subr.mxu0 0.0
      %1040 = vmatpush1.msra.mxu0 0.0
      %1041 = vmatprep.subr.mxu0 0.0
      %1042 = vmatpush1.msra.mxu0 0.0
      %1043 = vmatprep.subr.mxu0 0.0
      %1044 = vmatpush1.msra.mxu0 0.0
      %1045 = vmatprep.subr.mxu0 0.0
      %1046 = vmatpush1.msra.mxu0 0.0
      %1047 = vmatprep.subr.mxu0 0.0
      %1048 = vmatpush1.msra.mxu0 0.0
      %1049 = vmatprep.subr.mxu0 0.0
      %1050 = vmatpush1.msra.mxu0 0.0
      %1051 = vmatprep.mubr.f32.mxu0 0.0
      %1052 = vmatmul.mubr.f32.gmra.mrb[0].mxu0 %v455
      %v1053 = vpop.f32.mrb[0].mxu0
      %v1054 = vadd.f32 %v435, %v1053
      %v1055 = vpop.f32.mrb[0].mxu0
      %v1056 = vadd.f32 %v435, %v1055
      %1057 = vdwg.mxu0
      %v1058 = vmul.f32 %v557, 0.5
      %v1059 = vmul.f32 %v559, 0.5
      %v1060 = vmul.f32 %v628, 0.5
      %v1061 = vmul.f32 %v630, 0.5
      %v1062 = vmul.f32 %v699, 0.5
      %v1063 = vmul.f32 %v701, 0.5
      %v1064 = vmul.f32 %v770, 0.5
      %v1065 = vmul.f32 %v772, 0.5
      %v1066 = vmul.f32 %v841, 0.5
      %v1067 = vmul.f32 %v843, 0.5
      %v1068 = vmul.f32 %v912, 0.5
      %v1069 = vmul.f32 %v914, 0.5
      %v1070 = vmul.f32 %v983, 0.5
      %v1071 = vmul.f32 %v985, 0.5
      %v1072 = vmul.f32 %v1054, 0.5
      %v1073 = vmul.f32 %v1056, 0.5
      %v1074 = vtanh.pop %v1058
      %v1075 = vtanh.pop %v1059
      %v1076 = vtanh.pop %v1060
      %v1077 = vtanh.pop %v1061
      %v1078 = vtanh.pop %v1062
      %v1079 = vtanh.pop %v1063
      %v1080 = vtanh.pop %v1064
      %v1081 = vtanh.pop %v1065
      %v1082 = vtanh.pop %v1066
      %v1083 = vtanh.pop %v1067
      %v1084 = vtanh.pop %v1068
      %v1085 = vtanh.pop %v1069
      %v1086 = vtanh.pop %v1070
      %v1087 = vtanh.pop %v1071
      %v1088 = vtanh.pop %v1072
      %v1089 = vtanh.pop %v1073
      %v1090 = vadd.f32 %v1074, 1.0
      %v1091 = vadd.f32 %v1075, 1.0
      %v1092 = vadd.f32 %v1076, 1.0
      %v1093 = vadd.f32 %v1077, 1.0
      %v1094 = vadd.f32 %v1078, 1.0
      %v1095 = vadd.f32 %v1079, 1.0
      %v1096 = vadd.f32 %v1080, 1.0
      %v1097 = vadd.f32 %v1081, 1.0
      %v1098 = vadd.f32 %v1082, 1.0
      %v1099 = vadd.f32 %v1083, 1.0
      %v1100 = vadd.f32 %v1084, 1.0
      %v1101 = vadd.f32 %v1085, 1.0
      %v1102 = vadd.f32 %v1086, 1.0
      %v1103 = vadd.f32 %v1087, 1.0
      %v1104 = vadd.f32 %v1088, 1.0
      %v1105 = vadd.f32 %v1089, 1.0
      %v1106 = vmul.f32 %v1090, 0.5
      %v1107 = vmul.f32 %v1091, 0.5
      %v1108 = vmul.f32 %v1092, 0.5
      %v1109 = vmul.f32 %v1093, 0.5
      %v1110 = vmul.f32 %v1094, 0.5
      %v1111 = vmul.f32 %v1095, 0.5
      %v1112 = vmul.f32 %v1096, 0.5
      %v1113 = vmul.f32 %v1097, 0.5
      %v1114 = vmul.f32 %v1098, 0.5
      %v1115 = vmul.f32 %v1099, 0.5
      %v1116 = vmul.f32 %v1100, 0.5
      %v1117 = vmul.f32 %v1101, 0.5
      %v1118 = vmul.f32 %v1102, 0.5
      %v1119 = vmul.f32 %v1103, 0.5
      %v1120 = vmul.f32 %v1104, 0.5
      %v1121 = vmul.f32 %v1105, 0.5
      %v1122 = vld [vmem:[%s288] sm:$0xff]
      %v1123 = vld [vmem:[%s288 + $0x8] sm:$0xff]
      %v1124 = vld [vmem:[%s288 + $0x10] sm:$0xff]
      %v1125 = vld [vmem:[%s288 + $0x18] sm:$0xff]
      %v1126 = vld [vmem:[%s288 + $0x20] sm:$0xff]
      %v1127 = vld [vmem:[%s288 + $0x28] sm:$0xff]
      %v1128 = vld [vmem:[%s288 + $0x30] sm:$0xff]
      %v1129 = vld [vmem:[%s288 + $0x38] sm:$0xff]
      %v1130 = vld [vmem:[%s288 + $0x40] sm:$0xff]
      %v1131 = vld [vmem:[%s288 + $0x48] sm:$0xff]
      %v1132 = vld [vmem:[%s288 + $0x50] sm:$0xff]
      %v1133 = vld [vmem:[%s288 + $0x58] sm:$0xff]
      %v1134 = vld [vmem:[%s288 + $0x60] sm:$0xff]
      %v1135 = vld [vmem:[%s288 + $0x68] sm:$0xff]
      %v1136 = vld [vmem:[%s288 + $0x70] sm:$0xff]
      %v1137 = vld [vmem:[%s288 + $0x78] sm:$0xff]
      %v1138 = vmul.f32 %v1122, %v1106
      %v1139 = vmul.f32 %v1123, %v1107
      %v1140 = vmul.f32 %v1124, %v1108
      %v1141 = vmul.f32 %v1125, %v1109
      %v1142 = vmul.f32 %v1126, %v1110
      %v1143 = vmul.f32 %v1127, %v1111
      %v1144 = vmul.f32 %v1128, %v1112
      %v1145 = vmul.f32 %v1129, %v1113
      %v1146 = vmul.f32 %v1130, %v1114
      %v1147 = vmul.f32 %v1131, %v1115
      %v1148 = vmul.f32 %v1132, %v1116
      %v1149 = vmul.f32 %v1133, %v1117
      %v1150 = vmul.f32 %v1134, %v1118
      %v1151 = vmul.f32 %v1135, %v1119
      %v1152 = vmul.f32 %v1136, %v1120
      %v1153 = vmul.f32 %v1137, %v1121
      %1154 = vst [vmem:[%s310] sm:$0xff] %v1138
      %1155 = vst [vmem:[%s310 + $0x8] sm:$0xff] %v1139
      %1156 = vst [vmem:[%s310 + $0x10] sm:$0xff] %v1140
      %1157 = vst [vmem:[%s310 + $0x18] sm:$0xff] %v1141
      %1158 = vst [vmem:[%s310 + $0x20] sm:$0xff] %v1142
      %1159 = vst [vmem:[%s310 + $0x28] sm:$0xff] %v1143
      %1160 = vst [vmem:[%s310 + $0x30] sm:$0xff] %v1144
      %1161 = vst [vmem:[%s310 + $0x38] sm:$0xff] %v1145
      %1162 = vst [vmem:[%s310 + $0x40] sm:$0xff] %v1146
      %1163 = vst [vmem:[%s310 + $0x48] sm:$0xff] %v1147
      %1164 = vst [vmem:[%s310 + $0x50] sm:$0xff] %v1148
      %1165 = vst [vmem:[%s310 + $0x58] sm:$0xff] %v1149
      %1166 = vst [vmem:[%s310 + $0x60] sm:$0xff] %v1150
      %1167 = vst [vmem:[%s310 + $0x68] sm:$0xff] %v1151
      %1168 = vst [vmem:[%s310 + $0x70] sm:$0xff] %v1152
      %1169 = vst [vmem:[%s310 + $0x78] sm:$0xff] %v1153
      %s1170 = smul.u32 16, %s21
      %p1171 = scmp.lt.s32.totalorder %s20, 1
      %s1172 = scalar_select %p1171, %s20, 1
      %p1173 = scmp.lt.s32.totalorder %s1170, 15
      %s1174 = scalar_select %p1173, %s1170, 15
      %s1175 = smul.addr %s1172, 16
      %s1176 = sadd.s32 %s1174, %s1175
      %s1177 = smul.addr %s1176, 8
      %s1178 = scalar_lea.vmem %s5, %s1177
      // Predicated region
      $region41: #{project_excite_pallas.3} parent=39 // pred_check
        %p1179 = pneg %p172
      $region42: #{project_excite_pallas.3} parent=39 // pred_check_branch
        %1181 = sbr.rel (%p1179) target = $region44
      $region43: #{project_excite_pallas.3} parent=39 // pred_region
        %s1182 = smul.u32 16, %s21
      $region44: #{project_excite_pallas.3} parent=39 // pred_fallthru
        _
    $region40: #{project_excite_pallas.3} parent=5 // pred_fallthru
      _
    %p1183 = scmp.le.s32.totalorder 2, %s11
    // Predicated region
    $region45: #{project_excite_pallas.3} parent=5 // pred_check
      %p1184 = pneg %p1183
    $region46: #{project_excite_pallas.3} parent=5 // pred_check_branch
      %1186 = sbr.rel (%p1184) target = $region48
    $region47: #{project_excite_pallas.3} parent=5 // pred_region
      %s1187 = ssub.s32 %s11, 2
      // Predicated region
      $region49: #{project_excite_pallas.3} parent=47 // pred_check
        %p1188 = pneg %p178
      $region50: #{project_excite_pallas.3} parent=47 // pred_check_branch
        %1190 = sbr.rel (%p1188) target = $region52
      $region51: #{project_excite_pallas.3} parent=47 // pred_region
        %s1191 = smul.u32 16, %s23
        %p1192 = scmp.lt.s32.totalorder %s22, 1
        %s1193 = scalar_select %p1192, %s22, 1
        %p1194 = scmp.lt.s32.totalorder %s1191, 15
        %s1195 = scalar_select %p1194, %s1191, 15
        %s1196 = smul.addr %s1193, 16
        %s1197 = sadd.s32 %s1195, %s1196
        %s1198 = smul.addr %s1197, 8
        %s1199 = scalar_lea.vmem %s5, %s1198
      $region52: #{project_excite_pallas.3} parent=47 // pred_fallthru
        _
    $region48: #{project_excite_pallas.3} parent=5 // pred_fallthru
      _
  $region6: #{project_excite_pallas.3} parent=0 // loop_footer
    %s15 = sadd.s32 1, %s11
  $region7: #{project_excite_pallas.3} parent=0 // loop_footer_branch
    %10 = sbr.rel target = $region3
  $region8: #{project_excite_pallas.3} parent=0 // loop_exit
    _

</llo_original>
